<compile_context>
chip_gen: v7x
topology: tpu7x:2x2x1
jax: 0.10.0
libtpu: 0.0.40
codegen_flags: <defaults>
</compile_context>

<pallas_src>
import functools

import numpy as np
import jax
import jax.numpy as jnp
from jax.experimental import pallas as pl
from jax.experimental.pallas import tpu as pltpu

BN_EPS = 1e-5
BN_SCALE = float(1.0 / np.sqrt(1.0 + BN_EPS))  # eval BN, running stats (0, 1), affine (1, 0)


# ----------------------------- fused stage kernel ----------------------------
def _aff_blend(att_in, x, r, w1, b1, w2, b2, g):
    """att_in/x/r: (C, TM); w1: (IC, C); b1: (IC, 1); w2: (C, IC); b2/g: (C, 1)."""
    h = jnp.maximum(jnp.dot(w1, att_in, preferred_element_type=jnp.float32) + b1, 0.0)
    xl = jnp.dot(w2, h, preferred_element_type=jnp.float32) + b2
    wei = jax.nn.sigmoid(xl + g)            # local + (broadcast) global attention
    return x * wei + r * (1.0 - wei)


def _stage1_kernel(x_ref, r_ref, w1_ref, b1_ref, w2_ref, b2_ref, g_ref, o_ref):
    x = x_ref[0]
    r = r_ref[0]
    o_ref[0, :, :] = _aff_blend(x + r, x, r, w1_ref[...], b1_ref[...],
                                w2_ref[...], b2_ref[...], g_ref[0])


def _stage2_kernel(xi_ref, x_ref, r_ref, w1_ref, b1_ref, w2_ref, b2_ref, g_ref, o_ref):
    x = x_ref[0]
    r = r_ref[0]
    o_ref[0, :, :] = _aff_blend(xi_ref[0], x, r, w1_ref[...], b1_ref[...],
                                w2_ref[...], b2_ref[...], g_ref[0])


def _fused_aff_stage(att_in, x_p, r_p, p_local, g, *, tm):
    """One iAFF stage. att_in=None -> stage 1 (attention input is x+r, built in-kernel)."""
    B, C, HWp = x_p.shape
    IC = p_local["w1"].shape[0]

    act_spec = pl.BlockSpec((1, C, tm), lambda b, t: (b, 0, t))
    w1_spec = pl.BlockSpec((IC, C), lambda b, t: (0, 0))
    b1_spec = pl.BlockSpec((IC, 1), lambda b, t: (0, 0))
    w2_spec = pl.BlockSpec((C, IC), lambda b, t: (0, 0))
    b2_spec = pl.BlockSpec((C, 1), lambda b, t: (0, 0))
    g_spec = pl.BlockSpec((1, C, 1), lambda b, t: (b, 0, 0))

    if att_in is None:
        kernel = _stage1_kernel
        args = (x_p, r_p, p_local["w1"], p_local["b1"], p_local["w2"], p_local["b2"], g)
        in_specs = [act_spec, act_spec, w1_spec, b1_spec, w2_spec, b2_spec, g_spec]
    else:
        kernel = _stage2_kernel
        args = (att_in, x_p, r_p,
                p_local["w1"], p_local["b1"], p_local["w2"], p_local["b2"], g)
        in_specs = [act_spec, act_spec, act_spec,
                    w1_spec, b1_spec, w2_spec, b2_spec, g_spec]

    return pl.pallas_call(
        kernel,
        out_shape=jax.ShapeDtypeStruct((B, C, HWp), jnp.float32),
        grid_spec=pltpu.PrefetchScalarGridSpec(
            num_scalar_prefetch=0,
            grid=(B, HWp // tm),
            in_specs=in_specs,
            out_specs=act_spec),
        compiler_params=pltpu.CompilerParams(
            dimension_semantics=("parallel", "parallel")),
    )(*args)


# ----------------------------- tiny glue --------------------------------------
def _round_up(n, m):
    return ((n + m - 1) // m) * m


def _choose_tile(hw):
    """Spatial tile (lane axis): single tile per batch when small, else 512-wide tiles."""
    hw128 = _round_up(hw, 128)
    tm = hw128 if hw128 <= 2048 else 512
    return tm, _round_up(hw, tm)


def _global_mlp(v, p):
    """global_att applied to the (B, C) pooled vector. Tiny GEMMs -> plain jnp.dot."""
    h = jnp.maximum(v @ p["w1"].T + p["b1"][:, 0], 0.0)
    return h @ p["w2"].T + p["b2"][:, 0]


# ----------------------------- forward ----------------------------------------
@jax.jit
def iaff_forward(params, x, residual):
    """iAFF.forward(x, residual), eval-mode BatchNorm semantics."""
    B, C, H, W = x.shape
    HW = H * W
    tm, hwp = _choose_tile(HW)

    xf = x.reshape(B, C, HW)
    rf = residual.reshape(B, C, HW)
    pad = hwp - HW
    x_p = jnp.pad(xf, ((0, 0), (0, 0), (0, pad)))
    r_p = jnp.pad(rf, ((0, 0), (0, 0), (0, pad)))

    p_loc, p_glob, p_loc2 = params["local_att"], params["global_att"], params["local_att2"]

    # ---- stage 1: wei = sigmoid(local_att(xa) + global_att(xa)), xi = blend(x, r) ----
    xa_mean = jnp.mean(xf, axis=2) + jnp.mean(rf, axis=2)          # AdaptiveAvgPool2d(1)
    g1 = _global_mlp(xa_mean, p_glob)                              # (B, C)
    xi = _fused_aff_stage(None, x_p, r_p, p_loc, g1[:, :, None], tm=tm)

    # ---- stage 2: wei2 = sigmoid(local_att2(xi) + global_att(xi)), xo = blend(x, r) ---
    xi_mean = jnp.sum(xi, axis=2) / HW                             # padded columns are 0
    # NOTE: the reference forward calls self.global_att (not global_att2) here.
    g2 = _global_mlp(xi_mean, p_glob)
    xo = _fused_aff_stage(xi, x_p, r_p, p_loc2, g2[:, :, None], tm=tm)

    return xo[:, :, :HW].reshape(B, C, H, W)


# ----------------------------- parameters -------------------------------------
class KeyGen:
    def __init__(self, key):
        self._key = key
        self._i = 0

    def __call__(self):
        self._i += 1
        return jax.random.fold_in(self._key, self._i)


def _make_att_block(kg, C, IC):
    """Conv(C->IC,1x1)+BN+ReLU+Conv(IC->C,1x1)+BN with eval-mode BN folded into W/b."""
    w1 = jax.random.normal(kg(), (IC, C), jnp.float32) * (1.0 / np.sqrt(C))
    b1 = jax.random.normal(kg(), (IC,), jnp.float32) * (1.0 / np.sqrt(C))
    w2 = jax.random.normal(kg(), (C, IC), jnp.float32) * (1.0 / np.sqrt(IC))
    b2 = jax.random.normal(kg(), (C,), jnp.float32) * (1.0 / np.sqrt(IC))
    return dict(w1=w1 * BN_SCALE, b1=(b1 * BN_SCALE)[:, None],
                w2=w2 * BN_SCALE, b2=(b2 * BN_SCALE)[:, None])


def make_iaff_params(key, channels=64, r=4):
    IC = channels // r
    kg = KeyGen(key)
    return dict(
        local_att=_make_att_block(kg, channels, IC),
        global_att=_make_att_block(kg, channels, IC),
        local_att2=_make_att_block(kg, channels, IC),
        # global_att2 exists in the PyTorch module but is never used by its forward
        # (it calls self.global_att for xg2); kept only for parameter-count fidelity.
        global_att2=_make_att_block(kg, channels, IC),
    )


# ----------------------------- main --------------------------------------------
if __name__ == "__main__":
    channels, r = 64, 4
    B, H, W = 2, 16, 16

    root = jax.random.PRNGKey(0)
    kx, kres, kp = jax.random.split(root, 3)
    x = jax.random.normal(kx, (B, channels, H, W), dtype=jnp.float32)
    residual = jax.random.normal(kres, (B, channels, H, W), dtype=jnp.float32)

    params = make_iaff_params(kp, channels, r)

    out = iaff_forward(params, x, residual)
    out = jax.block_until_ready(out)
    assert out.shape == (B, channels, H, W), out.shape
    assert bool(jnp.all(jnp.isfinite(out)))
    print("KERNEL_OK")
</pallas_src>

<mosaic_0001>
module attributes {stable_mosaic.version = 11 : i64} {
  func.func @_stage1_kernel(%arg0: i32, %arg1: i32, %arg2: memref<1x64x256xf32, #tpu.memory_space<vmem>>, %arg3: memref<1x64x256xf32, #tpu.memory_space<vmem>>, %arg4: memref<16x64xf32, #tpu.memory_space<vmem>>, %arg5: memref<16x1xf32, #tpu.memory_space<vmem>>, %arg6: memref<64x16xf32, #tpu.memory_space<vmem>>, %arg7: memref<64x1xf32, #tpu.memory_space<vmem>>, %arg8: memref<1x64x1xf32, #tpu.memory_space<vmem>>, %arg9: memref<1x64x256xf32, #tpu.memory_space<vmem>>) attributes {dimension_semantics = [#tpu.dimension_semantics<parallel>, #tpu.dimension_semantics<parallel>], iteration_bounds = array<i64: 2, 1>, scalar_prefetch = 0 : i64, scratch_operands = 0 : i64, tpu.core_type = #tpu.core_type<tc>, window_params = [{transform_indices = @transform_0, window_bounds = array<i64: 1, 64, 256>}, {transform_indices = @transform_1, window_bounds = array<i64: 1, 64, 256>}, {pipeline_mode = #tpu.pipeline_mode<synchronous>, transform_indices = @transform_2, window_bounds = array<i64: 16, 64>}, {pipeline_mode = #tpu.pipeline_mode<synchronous>, transform_indices = @transform_3, window_bounds = array<i64: 16, 1>}, {pipeline_mode = #tpu.pipeline_mode<synchronous>, transform_indices = @transform_4, window_bounds = array<i64: 64, 16>}, {pipeline_mode = #tpu.pipeline_mode<synchronous>, transform_indices = @transform_5, window_bounds = array<i64: 64, 1>}, {transform_indices = @transform_6, window_bounds = array<i64: 1, 64, 1>}, {transform_indices = @transform_7, window_bounds = array<i64: 1, 64, 256>}]} {
    %c0 = arith.constant 0 : index
    %c0_0 = arith.constant 0 : index
    %c0_1 = arith.constant 0 : index
    %0 = vector.load %arg2[%c0, %c0_0, %c0_1] : memref<1x64x256xf32, #tpu.memory_space<vmem>>, vector<1x64x256xf32>
    %1 = vector.shape_cast %0 : vector<1x64x256xf32> to vector<64x256xf32>
    %c0_2 = arith.constant 0 : index
    %c0_3 = arith.constant 0 : index
    %c0_4 = arith.constant 0 : index
    %2 = vector.load %arg3[%c0_2, %c0_3, %c0_4] : memref<1x64x256xf32, #tpu.memory_space<vmem>>, vector<1x64x256xf32>
    %3 = vector.shape_cast %2 : vector<1x64x256xf32> to vector<64x256xf32>
    %4 = arith.addf %1, %3 : vector<64x256xf32>
    %c0_5 = arith.constant 0 : index
    %c0_6 = arith.constant 0 : index
    %5 = vector.load %arg4[%c0_5, %c0_6] : memref<16x64xf32, #tpu.memory_space<vmem>>, vector<16x64xf32>
    %c0_7 = arith.constant 0 : index
    %c0_8 = arith.constant 0 : index
    %6 = vector.load %arg5[%c0_7, %c0_8] : memref<16x1xf32, #tpu.memory_space<vmem>>, vector<16x1xf32>
    %c0_9 = arith.constant 0 : index
    %c0_10 = arith.constant 0 : index
    %7 = vector.load %arg6[%c0_9, %c0_10] : memref<64x16xf32, #tpu.memory_space<vmem>>, vector<64x16xf32>
    %c0_11 = arith.constant 0 : index
    %c0_12 = arith.constant 0 : index
    %8 = vector.load %arg7[%c0_11, %c0_12] : memref<64x1xf32, #tpu.memory_space<vmem>>, vector<64x1xf32>
    %c0_13 = arith.constant 0 : index
    %c0_14 = arith.constant 0 : index
    %c0_15 = arith.constant 0 : index
    %9 = vector.load %arg8[%c0_13, %c0_14, %c0_15] : memref<1x64x1xf32, #tpu.memory_space<vmem>>, vector<1x64x1xf32>
    %10 = vector.shape_cast %9 : vector<1x64x1xf32> to vector<64x1xf32>
    %cst = arith.constant dense<0.000000e+00> : vector<16x256xf32>
    %11 = tpu.matmul %5, %4, %cst {dimension_numbers = #tpu.dot_dimension_numbers<[1], [0], [0], [1], [0, 0, 1, 1], [], []>} : vector<16x64xf32>, vector<64x256xf32>, vector<16x256xf32> -> vector<16x256xf32>
    %12 = vector.broadcast %6 : vector<16x1xf32> to vector<16x256xf32>
    %13 = arith.addf %11, %12 : vector<16x256xf32>
    %cst_16 = arith.constant 0.000000e+00 : f32
    %14 = vector.broadcast %cst_16 : f32 to vector<16x256xf32>
    %15 = arith.maximumf %13, %14 : vector<16x256xf32>
    %cst_17 = arith.constant dense<0.000000e+00> : vector<64x256xf32>
    %16 = tpu.matmul %7, %15, %cst_17 {dimension_numbers = #tpu.dot_dimension_numbers<[1], [0], [0], [1], [0, 0, 1, 1], [], []>} : vector<64x16xf32>, vector<16x256xf32>, vector<64x256xf32> -> vector<64x256xf32>
    %17 = vector.broadcast %8 : vector<64x1xf32> to vector<64x256xf32>
    %18 = arith.addf %16, %17 : vector<64x256xf32>
    %19 = vector.broadcast %10 : vector<64x1xf32> to vector<64x256xf32>
    %20 = arith.addf %18, %19 : vector<64x256xf32>
    %21 = arith.negf %20 : vector<64x256xf32>
    %22 = math.exp %21 : vector<64x256xf32>
    %cst_18 = arith.constant 1.000000e+00 : f32
    %23 = vector.broadcast %cst_18 : f32 to vector<64x256xf32>
    %24 = arith.addf %23, %22 : vector<64x256xf32>
    %25 = arith.divf %23, %24 : vector<64x256xf32>
    %26 = arith.mulf %1, %25 : vector<64x256xf32>
    %cst_19 = arith.constant 1.000000e+00 : f32
    %27 = vector.broadcast %cst_19 : f32 to vector<64x256xf32>
    %28 = arith.subf %27, %25 : vector<64x256xf32>
    %29 = arith.mulf %3, %28 : vector<64x256xf32>
    %30 = arith.addf %26, %29 : vector<64x256xf32>
    %c0_20 = arith.constant 0 : index
    %c0_21 = arith.constant 0 : index
    %c0_22 = arith.constant 0 : index
    %31 = vector.load %arg9[%c0_20, %c0_21, %c0_22] : memref<1x64x256xf32, #tpu.memory_space<vmem>>, vector<1x64x256xf32>
    %32 = vector.shape_cast %31 : vector<1x64x256xf32> to vector<64x256xf32>
    %33 = vector.shape_cast %30 : vector<64x256xf32> to vector<1x64x256xf32>
    tpu.vector_store %arg9[%c0_20, %c0_21, %c0_22], %33 {strides = array<i32>} : memref<1x64x256xf32, #tpu.memory_space<vmem>>, vector<1x64x256xf32>,
    return
  }
  func.func @transform_0(%arg0: i32, %arg1: i32) -> (i32, i32, i32) {
    %c0_i32 = arith.constant 0 : i32
    %c0_i32_0 = arith.constant 0 : i32
    return %arg0, %c0_i32, %arg1 : i32, i32, i32
  }
  func.func @transform_1(%arg0: i32, %arg1: i32) -> (i32, i32, i32) {
    %c0_i32 = arith.constant 0 : i32
    %c0_i32_0 = arith.constant 0 : i32
    return %arg0, %c0_i32, %arg1 : i32, i32, i32
  }
  func.func @transform_2(%arg0: i32, %arg1: i32) -> (i32, i32) {
    %c0_i32 = arith.constant 0 : i32
    %c0_i32_0 = arith.constant 0 : i32
    %c0_i32_1 = arith.constant 0 : i32
    return %c0_i32, %c0_i32_0 : i32, i32
  }
  func.func @transform_3(%arg0: i32, %arg1: i32) -> (i32, i32) {
    %c0_i32 = arith.constant 0 : i32
    %c0_i32_0 = arith.constant 0 : i32
    %c0_i32_1 = arith.constant 0 : i32
    return %c0_i32, %c0_i32_0 : i32, i32
  }
  func.func @transform_4(%arg0: i32, %arg1: i32) -> (i32, i32) {
    %c0_i32 = arith.constant 0 : i32
    %c0_i32_0 = arith.constant 0 : i32
    %c0_i32_1 = arith.constant 0 : i32
    return %c0_i32, %c0_i32_0 : i32, i32
  }
  func.func @transform_5(%arg0: i32, %arg1: i32) -> (i32, i32) {
    %c0_i32 = arith.constant 0 : i32
    %c0_i32_0 = arith.constant 0 : i32
    %c0_i32_1 = arith.constant 0 : i32
    return %c0_i32, %c0_i32_0 : i32, i32
  }
  func.func @transform_6(%arg0: i32, %arg1: i32) -> (i32, i32, i32) {
    %c0_i32 = arith.constant 0 : i32
    %c0_i32_0 = arith.constant 0 : i32
    %c0_i32_1 = arith.constant 0 : i32
    return %arg0, %c0_i32, %c0_i32_0 : i32, i32, i32
  }
  func.func @transform_7(%arg0: i32, %arg1: i32) -> (i32, i32, i32) {
    %c0_i32 = arith.constant 0 : i32
    %c0_i32_0 = arith.constant 0 : i32
    return %arg0, %c0_i32, %arg1 : i32, i32, i32
  }
}

module attributes {stable_mosaic.version = 11 : i64} {
  func.func @_stage2_kernel(%arg0: i32, %arg1: i32, %arg2: memref<1x64x256xf32, #tpu.memory_space<vmem>>, %arg3: memref<1x64x256xf32, #tpu.memory_space<vmem>>, %arg4: memref<1x64x256xf32, #tpu.memory_space<vmem>>, %arg5: memref<16x64xf32, #tpu.memory_space<vmem>>, %arg6: memref<16x1xf32, #tpu.memory_space<vmem>>, %arg7: memref<64x16xf32, #tpu.memory_space<vmem>>, %arg8: memref<64x1xf32, #tpu.memory_space<vmem>>, %arg9: memref<1x64x1xf32, #tpu.memory_space<vmem>>, %arg10: memref<1x64x256xf32, #tpu.memory_space<vmem>>) attributes {dimension_semantics = [#tpu.dimension_semantics<parallel>, #tpu.dimension_semantics<parallel>], iteration_bounds = array<i64: 2, 1>, scalar_prefetch = 0 : i64, scratch_operands = 0 : i64, tpu.core_type = #tpu.core_type<tc>, window_params = [{transform_indices = @transform_0, window_bounds = array<i64: 1, 64, 256>}, {transform_indices = @transform_1, window_bounds = array<i64: 1, 64, 256>}, {transform_indices = @transform_2, window_bounds = array<i64: 1, 64, 256>}, {pipeline_mode = #tpu.pipeline_mode<synchronous>, transform_indices = @transform_3, window_bounds = array<i64: 16, 64>}, {pipeline_mode = #tpu.pipeline_mode<synchronous>, transform_indices = @transform_4, window_bounds = array<i64: 16, 1>}, {pipeline_mode = #tpu.pipeline_mode<synchronous>, transform_indices = @transform_5, window_bounds = array<i64: 64, 16>}, {pipeline_mode = #tpu.pipeline_mode<synchronous>, transform_indices = @transform_6, window_bounds = array<i64: 64, 1>}, {transform_indices = @transform_7, window_bounds = array<i64: 1, 64, 1>}, {transform_indices = @transform_8, window_bounds = array<i64: 1, 64, 256>}]} {
    %c0 = arith.constant 0 : index
    %c0_0 = arith.constant 0 : index
    %c0_1 = arith.constant 0 : index
    %0 = vector.load %arg3[%c0, %c0_0, %c0_1] : memref<1x64x256xf32, #tpu.memory_space<vmem>>, vector<1x64x256xf32>
    %1 = vector.shape_cast %0 : vector<1x64x256xf32> to vector<64x256xf32>
    %c0_2 = arith.constant 0 : index
    %c0_3 = arith.constant 0 : index
    %c0_4 = arith.constant 0 : index
    %2 = vector.load %arg4[%c0_2, %c0_3, %c0_4] : memref<1x64x256xf32, #tpu.memory_space<vmem>>, vector<1x64x256xf32>
    %3 = vector.shape_cast %2 : vector<1x64x256xf32> to vector<64x256xf32>
    %c0_5 = arith.constant 0 : index
    %c0_6 = arith.constant 0 : index
    %c0_7 = arith.constant 0 : index
    %4 = vector.load %arg2[%c0_5, %c0_6, %c0_7] : memref<1x64x256xf32, #tpu.memory_space<vmem>>, vector<1x64x256xf32>
    %5 = vector.shape_cast %4 : vector<1x64x256xf32> to vector<64x256xf32>
    %c0_8 = arith.constant 0 : index
    %c0_9 = arith.constant 0 : index
    %6 = vector.load %arg5[%c0_8, %c0_9] : memref<16x64xf32, #tpu.memory_space<vmem>>, vector<16x64xf32>
    %c0_10 = arith.constant 0 : index
    %c0_11 = arith.constant 0 : index
    %7 = vector.load %arg6[%c0_10, %c0_11] : memref<16x1xf32, #tpu.memory_space<vmem>>, vector<16x1xf32>
    %c0_12 = arith.constant 0 : index
    %c0_13 = arith.constant 0 : index
    %8 = vector.load %arg7[%c0_12, %c0_13] : memref<64x16xf32, #tpu.memory_space<vmem>>, vector<64x16xf32>
    %c0_14 = arith.constant 0 : index
    %c0_15 = arith.constant 0 : index
    %9 = vector.load %arg8[%c0_14, %c0_15] : memref<64x1xf32, #tpu.memory_space<vmem>>, vector<64x1xf32>
    %c0_16 = arith.constant 0 : index
    %c0_17 = arith.constant 0 : index
    %c0_18 = arith.constant 0 : index
    %10 = vector.load %arg9[%c0_16, %c0_17, %c0_18] : memref<1x64x1xf32, #tpu.memory_space<vmem>>, vector<1x64x1xf32>
    %11 = vector.shape_cast %10 : vector<1x64x1xf32> to vector<64x1xf32>
    %cst = arith.constant dense<0.000000e+00> : vector<16x256xf32>
    %12 = tpu.matmul %6, %5, %cst {dimension_numbers = #tpu.dot_dimension_numbers<[1], [0], [0], [1], [0, 0, 1, 1], [], []>} : vector<16x64xf32>, vector<64x256xf32>, vector<16x256xf32> -> vector<16x256xf32>
    %13 = vector.broadcast %7 : vector<16x1xf32> to vector<16x256xf32>
    %14 = arith.addf %12, %13 : vector<16x256xf32>
    %cst_19 = arith.constant 0.000000e+00 : f32
    %15 = vector.broadcast %cst_19 : f32 to vector<16x256xf32>
    %16 = arith.maximumf %14, %15 : vector<16x256xf32>
    %cst_20 = arith.constant dense<0.000000e+00> : vector<64x256xf32>
    %17 = tpu.matmul %8, %16, %cst_20 {dimension_numbers = #tpu.dot_dimension_numbers<[1], [0], [0], [1], [0, 0, 1, 1], [], []>} : vector<64x16xf32>, vector<16x256xf32>, vector<64x256xf32> -> vector<64x256xf32>
    %18 = vector.broadcast %9 : vector<64x1xf32> to vector<64x256xf32>
    %19 = arith.addf %17, %18 : vector<64x256xf32>
    %20 = vector.broadcast %11 : vector<64x1xf32> to vector<64x256xf32>
    %21 = arith.addf %19, %20 : vector<64x256xf32>
    %22 = arith.negf %21 : vector<64x256xf32>
    %23 = math.exp %22 : vector<64x256xf32>
    %cst_21 = arith.constant 1.000000e+00 : f32
    %24 = vector.broadcast %cst_21 : f32 to vector<64x256xf32>
    %25 = arith.addf %24, %23 : vector<64x256xf32>
    %26 = arith.divf %24, %25 : vector<64x256xf32>
    %27 = arith.mulf %1, %26 : vector<64x256xf32>
    %cst_22 = arith.constant 1.000000e+00 : f32
    %28 = vector.broadcast %cst_22 : f32 to vector<64x256xf32>
    %29 = arith.subf %28, %26 : vector<64x256xf32>
    %30 = arith.mulf %3, %29 : vector<64x256xf32>
    %31 = arith.addf %27, %30 : vector<64x256xf32>
    %c0_23 = arith.constant 0 : index
    %c0_24 = arith.constant 0 : index
    %c0_25 = arith.constant 0 : index
    %32 = vector.load %arg10[%c0_23, %c0_24, %c0_25] : memref<1x64x256xf32, #tpu.memory_space<vmem>>, vector<1x64x256xf32>
    %33 = vector.shape_cast %32 : vector<1x64x256xf32> to vector<64x256xf32>
    %34 = vector.shape_cast %31 : vector<64x256xf32> to vector<1x64x256xf32>
    tpu.vector_store %arg10[%c0_23, %c0_24, %c0_25], %34 {strides = array<i32>} : memref<1x64x256xf32, #tpu.memory_space<vmem>>, vector<1x64x256xf32>,
    return
  }
  func.func @transform_0(%arg0: i32, %arg1: i32) -> (i32, i32, i32) {
    %c0_i32 = arith.constant 0 : i32
    %c0_i32_0 = arith.constant 0 : i32
    return %arg0, %c0_i32, %arg1 : i32, i32, i32
  }
  func.func @transform_1(%arg0: i32, %arg1: i32) -> (i32, i32, i32) {
    %c0_i32 = arith.constant 0 : i32
    %c0_i32_0 = arith.constant 0 : i32
    return %arg0, %c0_i32, %arg1 : i32, i32, i32
  }
  func.func @transform_2(%arg0: i32, %arg1: i32) -> (i32, i32, i32) {
    %c0_i32 = arith.constant 0 : i32
    %c0_i32_0 = arith.constant 0 : i32
    return %arg0, %c0_i32, %arg1 : i32, i32, i32
  }
  func.func @transform_3(%arg0: i32, %arg1: i32) -> (i32, i32) {
    %c0_i32 = arith.constant 0 : i32
    %c0_i32_0 = arith.constant 0 : i32
    %c0_i32_1 = arith.constant 0 : i32
    return %c0_i32, %c0_i32_0 : i32, i32
  }
  func.func @transform_4(%arg0: i32, %arg1: i32) -> (i32, i32) {
    %c0_i32 = arith.constant 0 : i32
    %c0_i32_0 = arith.constant 0 : i32
    %c0_i32_1 = arith.constant 0 : i32
    return %c0_i32, %c0_i32_0 : i32, i32
  }
  func.func @transform_5(%arg0: i32, %arg1: i32) -> (i32, i32) {
    %c0_i32 = arith.constant 0 : i32
    %c0_i32_0 = arith.constant 0 : i32
    %c0_i32_1 = arith.constant 0 : i32
    return %c0_i32, %c0_i32_0 : i32, i32
  }
  func.func @transform_6(%arg0: i32, %arg1: i32) -> (i32, i32) {
    %c0_i32 = arith.constant 0 : i32
    %c0_i32_0 = arith.constant 0 : i32
    %c0_i32_1 = arith.constant 0 : i32
    return %c0_i32, %c0_i32_0 : i32, i32
  }
  func.func @transform_7(%arg0: i32, %arg1: i32) -> (i32, i32, i32) {
    %c0_i32 = arith.constant 0 : i32
    %c0_i32_0 = arith.constant 0 : i32
    %c0_i32_1 = arith.constant 0 : i32
    return %arg0, %c0_i32, %c0_i32_0 : i32, i32, i32
  }
  func.func @transform_8(%arg0: i32, %arg1: i32) -> (i32, i32, i32) {
    %c0_i32 = arith.constant 0 : i32
    %c0_i32_0 = arith.constant 0 : i32
    return %arg0, %c0_i32, %arg1 : i32, i32, i32
  }
}

</mosaic_0001>

<llo_original>
// kernel: iaff_forward.2
$region0: #{iaff_forward.2}
  #allocation0 [shape = 'u32[]', space=smem, size = 0x4, offset = 0x4, fixed_abs, tag = 'smem constant byte address 0x4 - core index']
  #allocation1 [shape = 'u32[144,128]{1,0:T(1,128)}', space=vmem, size = 0x12000, scoped, tag = 'internal scratch']
  %s0 = inlined_call_operand.vmem [shape: f32[2,64,256], index: 0, kind: input, shape index: {}]
  %s1 = inlined_call_operand.vmem [shape: f32[2,64,256], index: 1, kind: input, shape index: {}]
  %s2 = inlined_call_operand.vmem [shape: f32[16,64], index: 2, kind: input, shape index: {}]
  %s3 = inlined_call_operand.vmem [shape: f32[16,1], index: 3, kind: input, shape index: {}]
  %s4 = inlined_call_operand.vmem [shape: f32[64,16], index: 4, kind: input, shape index: {}]
  %s5 = inlined_call_operand.vmem [shape: f32[64,1], index: 5, kind: input, shape index: {}]
  %s6 = inlined_call_operand.vmem [shape: f32[2,64,1], index: 6, kind: input, shape index: {}]
  %s7 = inlined_call_operand.vmem [shape: f32[2,64,256], index: 7, kind: output, shape index: {}]
  %s8 = sld [smem:[#allocation0]]
  $region61: #{iaff_forward.2} parent=0
    _
  %s10 = ssub.s32 1, %s8
  %s11 = scalar_select 0, %s10, %s8
  loop: start=0, step=1, limit=4
  $region2: #{iaff_forward.2} parent=0 // loop_pre_header
    _
  $region3: #{iaff_forward.2} parent=0 // loop_header
    %s13 = sphi 0, %s17
    %p14 = scmp.ge.s32.totalorder %s13, 4
    %s20 = sphi 0, %s32
    %s21 = sphi 0, %s28
    %s22 = sphi 0, %s20
    %s23 = sphi 0, %s21
    %s24 = sphi 0, %s22
    %s25 = sphi 0, %s23
    %s37 = sphi 0, %s39
    %s40 = sphi 0, %s37
    %s41 = sphi 0, %s40
    %s57 = sphi 0, %s41
    %s65 = sphi 0, %s67
    %s68 = sphi 0, %s65
    %s69 = sphi 0, %s68
    %s85 = sphi 0, %s69
    %s89 = sphi 0, %s89
    %s91 = sphi 0, %s89
    %s92 = sphi 0, %s91
    %s106 = sphi 0, %s92
    %s110 = sphi 0, %s110
    %s112 = sphi 0, %s110
    %s113 = sphi 0, %s112
    %s127 = sphi 0, %s113
    %s131 = sphi 0, %s131
    %s133 = sphi 0, %s131
    %s134 = sphi 0, %s133
    %s148 = sphi 0, %s134
    %s152 = sphi 0, %s152
    %s154 = sphi 0, %s152
    %s155 = sphi 0, %s154
    %s169 = sphi 0, %s155
    %s175 = sphi 0, %s177
    %s178 = sphi 0, %s175
    %s179 = sphi 0, %s178
    %s195 = sphi 0, %s179
    %s203 = sphi 0, %s205
    %s206 = sphi 0, %s203
    %s207 = sphi 0, %s206
    %s223 = sphi 0, %s207
  $region4: #{iaff_forward.2} parent=0 // loop_header_branch
    %16 = sbr.rel (%p14) target = $region8
  $region5: #{iaff_forward.2} parent=0 // loop_body
    %s18 = ssub.s32 %s13, 1
    %s19 = ssub.s32 %s13, 2
    %s26 = sadd.s32 1, %s21
    %p27 = scmp.ge.s32.totalorder %s26, 1
    %s28 = scalar_select %p27, 0, %s26
    %s29 = sadd.s32 1, %s20
    %s30 = scalar_select %p27, %s29, %s20
    %p31 = scmp.ge.s32.totalorder %s30, 2
    %s32 = scalar_select %p31, 0, %s30
    %s33 = ssub.s32 %s20, %s32
    %s34 = ssub.s32 %s21, %s28
    %s35 = sor.u32 %s33, %s34
    %p36 = scmp.eq.s32.totalorder %s35, 0
    %s38 = sadd.s32 %s37, 1
    %s39 = scalar_select %p36, %s37, %s38
    %p42 = pneg %p36
    %p43 = scmp.eq.s32.totalorder %s13, 1
    %p44 = por %p42, %p43
    %p45 = scmp.ne.s32.totalorder %s37, %s40
    %p46 = scmp.eq.s32.totalorder %s13, 0
    %p47 = por %p45, %p46
    %p48 = scmp.ne.s32.totalorder %s37, %s40
    %p49 = scmp.eq.s32.totalorder %s18, 1
    %p50 = por %p48, %p49
    %p51 = scmp.ne.s32.totalorder %s40, %s41
    %p52 = scmp.eq.s32.totalorder %s18, 0
    %p53 = por %p51, %p52
    %p54 = scmp.ne.s32.totalorder %s40, %s41
    %p55 = scmp.eq.s32.totalorder %s19, 1
    %p56 = por %p54, %p55
    %p58 = scmp.ne.s32.totalorder %s41, %s57
    %p59 = scmp.eq.s32.totalorder %s19, 0
    %p60 = por %p58, %p59
    %s61 = ssub.s32 %s20, %s32
    %s62 = ssub.s32 %s21, %s28
    %s63 = sor.u32 %s61, %s62
    %p64 = scmp.eq.s32.totalorder %s63, 0
    %s66 = sadd.s32 %s65, 1
    %s67 = scalar_select %p64, %s65, %s66
    %p70 = pneg %p64
    %p71 = scmp.eq.s32.totalorder %s13, 1
    %p72 = por %p70, %p71
    %p73 = scmp.ne.s32.totalorder %s65, %s68
    %p74 = scmp.eq.s32.totalorder %s13, 0
    %p75 = por %p73, %p74
    %p76 = scmp.ne.s32.totalorder %s65, %s68
    %p77 = scmp.eq.s32.totalorder %s18, 1
    %p78 = por %p76, %p77
    %p79 = scmp.ne.s32.totalorder %s68, %s69
    %p80 = scmp.eq.s32.totalorder %s18, 0
    %p81 = por %p79, %p80
    %p82 = scmp.ne.s32.totalorder %s68, %s69
    %p83 = scmp.eq.s32.totalorder %s19, 1
    %p84 = por %p82, %p83
    %p86 = scmp.ne.s32.totalorder %s69, %s85
    %p87 = scmp.eq.s32.totalorder %s19, 0
    %p88 = por %p86, %p87
    %s90 = sadd.s32 %s89, 1
    %p93 = scmp.eq.s32.totalorder %s13, 1
    %p94 = scmp.ne.s32.totalorder %s89, %s91
    %p95 = scmp.eq.s32.totalorder %s13, 0
    %p96 = por %p94, %p95
    %p97 = scmp.ne.s32.totalorder %s89, %s91
    %p98 = scmp.eq.s32.totalorder %s18, 1
    %p99 = por %p97, %p98
    %p100 = scmp.ne.s32.totalorder %s91, %s92
    %p101 = scmp.eq.s32.totalorder %s18, 0
    %p102 = por %p100, %p101
    %p103 = scmp.ne.s32.totalorder %s91, %s92
    %p104 = scmp.eq.s32.totalorder %s19, 1
    %p105 = por %p103, %p104
    %p107 = scmp.ne.s32.totalorder %s92, %s106
    %p108 = scmp.eq.s32.totalorder %s19, 0
    %p109 = por %p107, %p108
    %s111 = sadd.s32 %s110, 1
    %p114 = scmp.eq.s32.totalorder %s13, 1
    %p115 = scmp.ne.s32.totalorder %s110, %s112
    %p116 = scmp.eq.s32.totalorder %s13, 0
    %p117 = por %p115, %p116
    %p118 = scmp.ne.s32.totalorder %s110, %s112
    %p119 = scmp.eq.s32.totalorder %s18, 1
    %p120 = por %p118, %p119
    %p121 = scmp.ne.s32.totalorder %s112, %s113
    %p122 = scmp.eq.s32.totalorder %s18, 0
    %p123 = por %p121, %p122
    %p124 = scmp.ne.s32.totalorder %s112, %s113
    %p125 = scmp.eq.s32.totalorder %s19, 1
    %p126 = por %p124, %p125
    %p128 = scmp.ne.s32.totalorder %s113, %s127
    %p129 = scmp.eq.s32.totalorder %s19, 0
    %p130 = por %p128, %p129
    %s132 = sadd.s32 %s131, 1
    %p135 = scmp.eq.s32.totalorder %s13, 1
    %p136 = scmp.ne.s32.totalorder %s131, %s133
    %p137 = scmp.eq.s32.totalorder %s13, 0
    %p138 = por %p136, %p137
    %p139 = scmp.ne.s32.totalorder %s131, %s133
    %p140 = scmp.eq.s32.totalorder %s18, 1
    %p141 = por %p139, %p140
    %p142 = scmp.ne.s32.totalorder %s133, %s134
    %p143 = scmp.eq.s32.totalorder %s18, 0
    %p144 = por %p142, %p143
    %p145 = scmp.ne.s32.totalorder %s133, %s134
    %p146 = scmp.eq.s32.totalorder %s19, 1
    %p147 = por %p145, %p146
    %p149 = scmp.ne.s32.totalorder %s134, %s148
    %p150 = scmp.eq.s32.totalorder %s19, 0
    %p151 = por %p149, %p150
    %s153 = sadd.s32 %s152, 1
    %p156 = scmp.eq.s32.totalorder %s13, 1
    %p157 = scmp.ne.s32.totalorder %s152, %s154
    %p158 = scmp.eq.s32.totalorder %s13, 0
    %p159 = por %p157, %p158
    %p160 = scmp.ne.s32.totalorder %s152, %s154
    %p161 = scmp.eq.s32.totalorder %s18, 1
    %p162 = por %p160, %p161
    %p163 = scmp.ne.s32.totalorder %s154, %s155
    %p164 = scmp.eq.s32.totalorder %s18, 0
    %p165 = por %p163, %p164
    %p166 = scmp.ne.s32.totalorder %s154, %s155
    %p167 = scmp.eq.s32.totalorder %s19, 1
    %p168 = por %p166, %p167
    %p170 = scmp.ne.s32.totalorder %s155, %s169
    %p171 = scmp.eq.s32.totalorder %s19, 0
    %p172 = por %p170, %p171
    %s173 = ssub.s32 %s20, %s32
    %p174 = scmp.eq.s32.totalorder %s173, 0
    %s176 = sadd.s32 %s175, 1
    %s177 = scalar_select %p174, %s175, %s176
    %p180 = pneg %p174
    %p181 = scmp.eq.s32.totalorder %s13, 1
    %p182 = por %p180, %p181
    %p183 = scmp.ne.s32.totalorder %s175, %s178
    %p184 = scmp.eq.s32.totalorder %s13, 0
    %p185 = por %p183, %p184
    %p186 = scmp.ne.s32.totalorder %s175, %s178
    %p187 = scmp.eq.s32.totalorder %s18, 1
    %p188 = por %p186, %p187
    %p189 = scmp.ne.s32.totalorder %s178, %s179
    %p190 = scmp.eq.s32.totalorder %s18, 0
    %p191 = por %p189, %p190
    %p192 = scmp.ne.s32.totalorder %s178, %s179
    %p193 = scmp.eq.s32.totalorder %s19, 1
    %p194 = por %p192, %p193
    %p196 = scmp.ne.s32.totalorder %s179, %s195
    %p197 = scmp.eq.s32.totalorder %s19, 0
    %p198 = por %p196, %p197
    %s199 = ssub.s32 %s20, %s32
    %s200 = ssub.s32 %s21, %s28
    %s201 = sor.u32 %s199, %s200
    %p202 = scmp.eq.s32.totalorder %s201, 0
    %s204 = sadd.s32 %s203, 1
    %s205 = scalar_select %p202, %s203, %s204
    %p208 = pneg %p202
    %p209 = scmp.eq.s32.totalorder %s13, 1
    %p210 = por %p208, %p209
    %p211 = scmp.ne.s32.totalorder %s203, %s206
    %p212 = scmp.eq.s32.totalorder %s13, 0
    %p213 = por %p211, %p212
    %p214 = scmp.ne.s32.totalorder %s203, %s206
    %p215 = scmp.eq.s32.totalorder %s18, 1
    %p216 = por %p214, %p215
    %p217 = scmp.ne.s32.totalorder %s206, %s207
    %p218 = scmp.eq.s32.totalorder %s18, 0
    %p219 = por %p217, %p218
    %p220 = scmp.ne.s32.totalorder %s206, %s207
    %p221 = scmp.eq.s32.totalorder %s19, 1
    %p222 = por %p220, %p221
    %p224 = scmp.ne.s32.totalorder %s207, %s223
    %p225 = scmp.eq.s32.totalorder %s19, 0
    %p226 = por %p224, %p225
    %p227 = scmp.le.s32.totalorder 1, %s13
    %p228 = scmp.lt.s32.totalorder %s13, 3
    %p229 = pnand %p227, %p228
    %p230 = pneg %p229
    // Predicated region
    $region9: #{iaff_forward.2} parent=5 // pred_check
      _
    $region10: #{iaff_forward.2} parent=5 // pred_check_branch
      %232 = sbr.rel (%p229) target = $region12
    $region11: #{iaff_forward.2} parent=5 // pred_region
      %s233 = ssub.s32 %s13, 1
      // Predicated region
      $region13: #{iaff_forward.2} parent=11 // pred_check
        %p234 = pneg %p102
      $region14: #{iaff_forward.2} parent=11 // pred_check_branch
        %236 = sbr.rel (%p234) target = $region16
      $region15: #{iaff_forward.2} parent=11 // pred_region
        _
      $region16: #{iaff_forward.2} parent=11 // pred_fallthru
        _
      // Predicated region
      $region17: #{iaff_forward.2} parent=11 // pred_check
        %p237 = pneg %p123
      $region18: #{iaff_forward.2} parent=11 // pred_check_branch
        %239 = sbr.rel (%p237) target = $region20
      $region19: #{iaff_forward.2} parent=11 // pred_region
        _
      $region20: #{iaff_forward.2} parent=11 // pred_fallthru
        _
      // Predicated region
      $region21: #{iaff_forward.2} parent=11 // pred_check
        %p240 = pneg %p144
      $region22: #{iaff_forward.2} parent=11 // pred_check_branch
        %242 = sbr.rel (%p240) target = $region24
      $region23: #{iaff_forward.2} parent=11 // pred_region
        _
      $region24: #{iaff_forward.2} parent=11 // pred_fallthru
        _
      // Predicated region
      $region25: #{iaff_forward.2} parent=11 // pred_check
        %p243 = pneg %p165
      $region26: #{iaff_forward.2} parent=11 // pred_check_branch
        %245 = sbr.rel (%p243) target = $region28
      $region27: #{iaff_forward.2} parent=11 // pred_region
        _
      $region28: #{iaff_forward.2} parent=11 // pred_fallthru
        _
    $region12: #{iaff_forward.2} parent=5 // pred_fallthru
      _
    %p246 = scmp.lt.s32.totalorder %s13, 2
    // Predicated region
    $region29: #{iaff_forward.2} parent=5 // pred_check
      %p247 = pneg %p246
    $region30: #{iaff_forward.2} parent=5 // pred_check_branch
      %249 = sbr.rel (%p247) target = $region32
    $region31: #{iaff_forward.2} parent=5 // pred_region
      // Predicated region
      $region33: #{iaff_forward.2} parent=31 // pred_check
        %p250 = pneg %p47
      $region34: #{iaff_forward.2} parent=31 // pred_check_branch
        %252 = sbr.rel (%p250) target = $region36
      $region35: #{iaff_forward.2} parent=31 // pred_region
        %s253 = smul.u32 2, %s21
        %p254 = scmp.lt.s32.totalorder %s20, 1
        %s255 = scalar_select %p254, %s20, 1
        %p256 = scmp.lt.s32.totalorder %s253, 1
        %s257 = scalar_select %p256, %s253, 1
        %s258 = smul.addr %s255, 16
        %s259 = sadd.s32 %s257, %s258
        %s260 = smul.addr %s259, 8
        %s261 = scalar_lea.vmem %s0, %s260
        %s262 = smul.u32 2, %s21
      $region36: #{iaff_forward.2} parent=31 // pred_fallthru
        _
      // Predicated region
      $region37: #{iaff_forward.2} parent=31 // pred_check
        %p263 = pneg %p75
      $region38: #{iaff_forward.2} parent=31 // pred_check_branch
        %265 = sbr.rel (%p263) target = $region40
      $region39: #{iaff_forward.2} parent=31 // pred_region
        %s266 = smul.u32 2, %s21
        %p267 = scmp.lt.s32.totalorder %s20, 1
        %s268 = scalar_select %p267, %s20, 1
        %p269 = scmp.lt.s32.totalorder %s266, 1
        %s270 = scalar_select %p269, %s266, 1
        %s271 = smul.addr %s268, 16
        %s272 = sadd.s32 %s270, %s271
        %s273 = smul.addr %s272, 8
        %s274 = scalar_lea.vmem %s1, %s273
        %s275 = smul.u32 2, %s21
      $region40: #{iaff_forward.2} parent=31 // pred_fallthru
        _
      // Predicated region
      $region41: #{iaff_forward.2} parent=31 // pred_check
        %p276 = pneg %p185
      $region42: #{iaff_forward.2} parent=31 // pred_check_branch
        %278 = sbr.rel (%p276) target = $region44
      $region43: #{iaff_forward.2} parent=31 // pred_region
        %p279 = scmp.lt.s32.totalorder %s20, 1
        %s280 = scalar_select %p279, %s20, 1
        %s281 = smul.addr %s280, 8
        %s282 = smul.addr %s281, 8
        %s283 = scalar_lea.vmem %s6, %s282
      $region44: #{iaff_forward.2} parent=31 // pred_fallthru
        _
    $region32: #{iaff_forward.2} parent=5 // pred_fallthru
      _
    %p284 = scmp.le.s32.totalorder 1, %s13
    %p285 = scmp.lt.s32.totalorder %s13, 3
    %p286 = pnand %p284, %p285
    %p287 = pneg %p286
    // Predicated region
    $region45: #{iaff_forward.2} parent=5 // pred_check
      _
    $region46: #{iaff_forward.2} parent=5 // pred_check_branch
      %289 = sbr.rel (%p286) target = $region48
    $region47: #{iaff_forward.2} parent=5 // pred_region
      %s290 = ssub.s32 %s13, 1
      %s291 = smul.u32 2, %s23
      %p292 = scmp.lt.s32.totalorder %s22, 1
      %s293 = scalar_select %p292, %s22, 1
      %p294 = scmp.lt.s32.totalorder %s291, 1
      %s295 = scalar_select %p294, %s291, 1
      %s296 = smul.addr %s293, 16
      %s297 = sadd.s32 %s295, %s296
      %s298 = smul.addr %s297, 8
      %s299 = scalar_lea.vmem %s0, %s298
      %p300 = pneg %p53
      %p301 = pneg %p50
      %s302 = smul.u32 2, %s23
      %p303 = scmp.lt.s32.totalorder %s22, 1
      %s304 = scalar_select %p303, %s22, 1
      %p305 = scmp.lt.s32.totalorder %s302, 1
      %s306 = scalar_select %p305, %s302, 1
      %s307 = smul.addr %s304, 16
      %s308 = sadd.s32 %s306, %s307
      %s309 = smul.addr %s308, 8
      %s310 = scalar_lea.vmem %s1, %s309
      %p311 = pneg %p81
      %p312 = pneg %p78
      %p313 = pneg %p102
      %p314 = pneg %p99
      %p315 = pneg %p123
      %p316 = pneg %p120
      %p317 = pneg %p144
      %p318 = pneg %p141
      %p319 = pneg %p165
      %p320 = pneg %p162
      %p321 = scmp.lt.s32.totalorder %s22, 1
      %s322 = scalar_select %p321, %s22, 1
      %s323 = smul.addr %s322, 8
      %s324 = smul.addr %s323, 8
      %s325 = scalar_lea.vmem %s6, %s324
      %p326 = pneg %p191
      %p327 = pneg %p188
      %p328 = pneg %p219
      %p329 = pneg %p216
      %s330 = smul.u32 2, %s23
      %p331 = scmp.lt.s32.totalorder %s22, 1
      %s332 = scalar_select %p331, %s22, 1
      %p333 = scmp.lt.s32.totalorder %s330, 1
      %s334 = scalar_select %p333, %s330, 1
      %s335 = smul.addr %s332, 16
      %s336 = sadd.s32 %s334, %s335
      %s337 = smul.addr %s336, 8
      %s338 = scalar_lea.vmem %s7, %s337
      %s339 = smul.u32 2, %s23
      %p340 = scmp.lt.s32.totalorder %s22, 1
      %s341 = scalar_select %p340, %s22, 1
      %p342 = scmp.lt.s32.totalorder %s339, 1
      %s343 = scalar_select %p342, %s339, 1
      %s344 = smul.addr %s341, 16
      %s345 = sadd.s32 %s343, %s344
      %s346 = smul.addr %s345, 8
      %s347 = scalar_lea.vmem %s0, %s346
      %s348 = smul.u32 2, %s23
      %s349 = smul.u32 2, %s23
      %p350 = scmp.lt.s32.totalorder %s22, 1
      %s351 = scalar_select %p350, %s22, 1
      %p352 = scmp.lt.s32.totalorder %s349, 1
      %s353 = scalar_select %p352, %s349, 1
      %s354 = smul.addr %s351, 16
      %s355 = sadd.s32 %s353, %s354
      %s356 = smul.addr %s355, 8
      %s357 = scalar_lea.vmem %s1, %s356
      %s358 = smul.u32 2, %s23
      %p359 = scmp.lt.s32.totalorder %s22, 1
      %s360 = scalar_select %p359, %s22, 1
      %s361 = smul.addr %s360, 8
      %s362 = smul.addr %s361, 8
      %s363 = scalar_lea.vmem %s6, %s362
      %s364 = smul.u32 2, %s23
      %p365 = scmp.lt.s32.totalorder %s22, 1
      %s366 = scalar_select %p365, %s22, 1
      %p367 = scmp.lt.s32.totalorder %s364, 1
      %s368 = scalar_select %p367, %s364, 1
      %s369 = smul.addr %s366, 16
      %s370 = sadd.s32 %s368, %s369
      %s371 = smul.addr %s370, 8
      %s372 = scalar_lea.vmem %s7, %s371
      %s373 = smul.u32 2, %s23
      %v374 = vld [vmem:[%s347] sm:$0xff]
      %v375 = vld [vmem:[%s347 + $0x8] sm:$0xff]
      %v376 = vld [vmem:[%s347 + $0x10] sm:$0xff]
      %v377 = vld [vmem:[%s347 + $0x18] sm:$0xff]
      %v378 = vld [vmem:[%s347 + $0x20] sm:$0xff]
      %v379 = vld [vmem:[%s347 + $0x28] sm:$0xff]
      %v380 = vld [vmem:[%s347 + $0x30] sm:$0xff]
      %v381 = vld [vmem:[%s347 + $0x38] sm:$0xff]
      %v382 = vld [vmem:[%s347 + $0x40] sm:$0xff]
      %v383 = vld [vmem:[%s347 + $0x48] sm:$0xff]
      %v384 = vld [vmem:[%s347 + $0x50] sm:$0xff]
      %v385 = vld [vmem:[%s347 + $0x58] sm:$0xff]
      %v386 = vld [vmem:[%s347 + $0x60] sm:$0xff]
      %v387 = vld [vmem:[%s347 + $0x68] sm:$0xff]
      %v388 = vld [vmem:[%s347 + $0x70] sm:$0xff]
      %v389 = vld [vmem:[%s347 + $0x78] sm:$0xff]
      %v390 = vld [vmem:[%s357] sm:$0xff]
      %v391 = vld [vmem:[%s357 + $0x8] sm:$0xff]
      %v392 = vld [vmem:[%s357 + $0x10] sm:$0xff]
      %v393 = vld [vmem:[%s357 + $0x18] sm:$0xff]
      %v394 = vld [vmem:[%s357 + $0x20] sm:$0xff]
      %v395 = vld [vmem:[%s357 + $0x28] sm:$0xff]
      %v396 = vld [vmem:[%s357 + $0x30] sm:$0xff]
      %v397 = vld [vmem:[%s357 + $0x38] sm:$0xff]
      %v398 = vld [vmem:[%s357 + $0x40] sm:$0xff]
      %v399 = vld [vmem:[%s357 + $0x48] sm:$0xff]
      %v400 = vld [vmem:[%s357 + $0x50] sm:$0xff]
      %v401 = vld [vmem:[%s357 + $0x58] sm:$0xff]
      %v402 = vld [vmem:[%s357 + $0x60] sm:$0xff]
      %v403 = vld [vmem:[%s357 + $0x68] sm:$0xff]
      %v404 = vld [vmem:[%s357 + $0x70] sm:$0xff]
      %v405 = vld [vmem:[%s357 + $0x78] sm:$0xff]
      %v406 = vadd.f32 %v374, %v390
      %v407 = vadd.f32 %v375, %v391
      %v408 = vadd.f32 %v376, %v392
      %v409 = vadd.f32 %v377, %v393
      %v410 = vadd.f32 %v378, %v394
      %v411 = vadd.f32 %v379, %v395
      %v412 = vadd.f32 %v380, %v396
      %v413 = vadd.f32 %v381, %v397
      %v414 = vadd.f32 %v382, %v398
      %v415 = vadd.f32 %v383, %v399
      %v416 = vadd.f32 %v384, %v400
      %v417 = vadd.f32 %v385, %v401
      %v418 = vadd.f32 %v386, %v402
      %v419 = vadd.f32 %v387, %v403
      %v420 = vadd.f32 %v388, %v404
      %v421 = vadd.f32 %v389, %v405
      %v422 = vld [vmem:[%s2] sm:$0xff]
      %v423 = vld [vmem:[%s2 + $0x8] sm:$0xff]
      %v424 = vld [vmem:[%s3] sm:$0xff]
      %v425 = vld [vmem:[%s3 + $0x8] sm:$0xff]
      %v426 = vld [vmem:[%s4] sm:$0xff]
      %v427 = vld [vmem:[%s4 + $0x8] sm:$0xff]
      %v428 = vld [vmem:[%s4 + $0x10] sm:$0xff]
      %v429 = vld [vmem:[%s4 + $0x18] sm:$0xff]
      %v430 = vld [vmem:[%s4 + $0x20] sm:$0xff]
      %v431 = vld [vmem:[%s4 + $0x28] sm:$0xff]
      %v432 = vld [vmem:[%s4 + $0x30] sm:$0xff]
      %v433 = vld [vmem:[%s4 + $0x38] sm:$0xff]
      %v434 = vld [vmem:[%s5] sm:$0xff]
      %v435 = vld [vmem:[%s5 + $0x8] sm:$0xff]
      %v436 = vld [vmem:[%s5 + $0x10] sm:$0xff]
      %v437 = vld [vmem:[%s5 + $0x18] sm:$0xff]
      %v438 = vld [vmem:[%s5 + $0x20] sm:$0xff]
      %v439 = vld [vmem:[%s5 + $0x28] sm:$0xff]
      %v440 = vld [vmem:[%s5 + $0x30] sm:$0xff]
      %v441 = vld [vmem:[%s5 + $0x38] sm:$0xff]
      %v442 = vld [vmem:[%s363] sm:$0xff]
      %v443 = vld [vmem:[%s363 + $0x8] sm:$0xff]
      %v444 = vld [vmem:[%s363 + $0x10] sm:$0xff]
      %v445 = vld [vmem:[%s363 + $0x18] sm:$0xff]
      %v446 = vld [vmem:[%s363 + $0x20] sm:$0xff]
      %v447 = vld [vmem:[%s363 + $0x28] sm:$0xff]
      %v448 = vld [vmem:[%s363 + $0x30] sm:$0xff]
      %v449 = vld [vmem:[%s363 + $0x38] sm:$0xff]
      %451 = vset.pattern.permute.xlu0 0
      %452 = vperm.xlu0 %451, %v424
      %v453 = vpop.permute.xlu0 %452
      %456 = vset.pattern.permute.xlu0 0
      %457 = vperm.xlu0 %456, %v425
      %v458 = vpop.permute.xlu0 %457
      %vm460 = vcmask 523264
      %v462 = vsel %vm460, %v422, 0
      %v465 = vsel %vm460, %v423, 0
      %467 = vmatprep.subr.mxu0 %v407
      %468 = vmatpush1.msra.mxu0 %v406
      %469 = vmatprep.subr.mxu0 %v409
      %470 = vmatpush1.msra.mxu0 %v408
      %471 = vmatprep.subr.mxu0 %v411
      %472 = vmatpush1.msra.mxu0 %v410
      %473 = vmatprep.subr.mxu0 %v413
      %474 = vmatpush1.msra.mxu0 %v412
      %475 = vmatprep.subr.mxu0 %v415
      %476 = vmatpush1.msra.mxu0 %v414
      %477 = vmatprep.subr.mxu0 %v417
      %478 = vmatpush1.msra.mxu0 %v416
      %479 = vmatprep.subr.mxu0 %v419
      %480 = vmatpush1.msra.mxu0 %v418
      %481 = vmatprep.subr.mxu0 %v421
      %482 = vmatpush1.msra.mxu0 %v420
      %483 = vmatprep.subr.mxu0 0.0
      %484 = vmatpush1.msra.mxu0 0.0
      %485 = vmatprep.subr.mxu0 0.0
      %486 = vmatpush1.msra.mxu0 0.0
      %487 = vmatprep.subr.mxu0 0.0
      %488 = vmatpush1.msra.mxu0 0.0
      %489 = vmatprep.subr.mxu0 0.0
      %490 = vmatpush1.msra.mxu0 0.0
      %491 = vmatprep.subr.mxu0 0.0
      %492 = vmatpush1.msra.mxu0 0.0
      %493 = vmatprep.subr.mxu0 0.0
      %494 = vmatpush1.msra.mxu0 0.0
      %495 = vmatprep.subr.mxu0 0.0
      %496 = vmatpush1.msra.mxu0 0.0
      %497 = vmatprep.subr.mxu0 0.0
      %498 = vmatpush1.msra.mxu0 0.0
      %499 = vmatprep.subr.mxu0 0.0
      %500 = vmatpush1.msra.mxu0 0.0
      %501 = vmatprep.subr.mxu0 0.0
      %502 = vmatpush1.msra.mxu0 0.0
      %503 = vmatprep.subr.mxu0 0.0
      %504 = vmatpush1.msra.mxu0 0.0
      %505 = vmatprep.subr.mxu0 0.0
      %506 = vmatpush1.msra.mxu0 0.0
      %507 = vmatprep.subr.mxu0 0.0
      %508 = vmatpush1.msra.mxu0 0.0
      %509 = vmatprep.subr.mxu0 0.0
      %510 = vmatpush1.msra.mxu0 0.0
      %511 = vmatprep.subr.mxu0 0.0
      %512 = vmatpush1.msra.mxu0 0.0
      %513 = vmatprep.subr.mxu0 0.0
      %514 = vmatpush1.msra.mxu0 0.0
      %515 = vmatprep.subr.mxu0 0.0
      %516 = vmatpush1.msra.mxu0 0.0
      %517 = vmatprep.subr.mxu0 0.0
      %518 = vmatpush1.msra.mxu0 0.0
      %519 = vmatprep.subr.mxu0 0.0
      %520 = vmatpush1.msra.mxu0 0.0
      %521 = vmatprep.subr.mxu0 0.0
      %522 = vmatpush1.msra.mxu0 0.0
      %523 = vmatprep.subr.mxu0 0.0
      %524 = vmatpush1.msra.mxu0 0.0
      %525 = vmatprep.subr.mxu0 0.0
      %526 = vmatpush1.msra.mxu0 0.0
      %527 = vmatprep.subr.mxu0 0.0
      %528 = vmatpush1.msra.mxu0 0.0
      %529 = vmatprep.subr.mxu0 0.0
      %530 = vmatpush1.msra.mxu0 0.0
      %531 = vmatprep.mubr.f32.mxu0 0.0
      %532 = vmatmul.mubr.f32.gmra.mrb[0].mxu0 %v462
      %v533 = vpop.f32.mrb[0].mxu0
      %v534 = vadd.f32 %v453, %v533
      %v535 = vpop.f32.mrb[0].mxu0
      %v536 = vadd.f32 %v453, %v535
      %537 = vmatprep.mubr.f32.mxu0 0.0
      %538 = vmatmul.mubr.f32.gmra.mrb[0].mxu0 %v465
      %v539 = vpop.f32.mrb[0].mxu0
      %v540 = vadd.f32 %v458, %v539
      %v541 = vpop.f32.mrb[0].mxu0
      %v542 = vadd.f32 %v458, %v541
      %543 = vdwg.mxu0
      %v544 = vmax.f32 %v534, 0.0
      %v545 = vmax.f32 %v536, 0.0
      %v546 = vmax.f32 %v540, 0.0
      %v547 = vmax.f32 %v542, 0.0
      %549 = vset.pattern.permute.xlu0 0
      %550 = vperm.xlu0 %549, %v434
      %v551 = vpop.permute.xlu0 %550
      %554 = vset.pattern.permute.xlu0 0
      %555 = vperm.xlu0 %554, %v435
      %v556 = vpop.permute.xlu0 %555
      %559 = vset.pattern.permute.xlu0 0
      %560 = vperm.xlu0 %559, %v436
      %v561 = vpop.permute.xlu0 %560
      %564 = vset.pattern.permute.xlu0 0
      %565 = vperm.xlu0 %564, %v437
      %v566 = vpop.permute.xlu0 %565
      %569 = vset.pattern.permute.xlu0 0
      %570 = vperm.xlu0 %569, %v438
      %v571 = vpop.permute.xlu0 %570
      %574 = vset.pattern.permute.xlu0 0
      %575 = vperm.xlu0 %574, %v439
      %v576 = vpop.permute.xlu0 %575
      %579 = vset.pattern.permute.xlu0 0
      %580 = vperm.xlu0 %579, %v440
      %v581 = vpop.permute.xlu0 %580
      %584 = vset.pattern.permute.xlu0 0
      %585 = vperm.xlu0 %584, %v441
      %v586 = vpop.permute.xlu0 %585
      %vm588 = vcmask 130048
      %v590 = vsel %vm588, %v426, 0
      %v593 = vsel %vm588, %v427, 0
      %v596 = vsel %vm588, %v428, 0
      %v599 = vsel %vm588, %v429, 0
      %v602 = vsel %vm588, %v430, 0
      %v605 = vsel %vm588, %v431, 0
      %v608 = vsel %vm588, %v432, 0
      %v611 = vsel %vm588, %v433, 0
      %613 = vmatprep.subr.mxu0 %v545
      %614 = vmatpush1.msra.mxu0 %v544
      %615 = vmatprep.subr.mxu0 %v547
      %616 = vmatpush1.msra.mxu0 %v546
      %617 = vmatprep.subr.mxu0 0.0
      %618 = vmatpush1.msra.mxu0 0.0
      %619 = vmatprep.subr.mxu0 0.0
      %620 = vmatpush1.msra.mxu0 0.0
      %621 = vmatprep.subr.mxu0 0.0
      %622 = vmatpush1.msra.mxu0 0.0
      %623 = vmatprep.subr.mxu0 0.0
      %624 = vmatpush1.msra.mxu0 0.0
      %625 = vmatprep.subr.mxu0 0.0
      %626 = vmatpush1.msra.mxu0 0.0
      %627 = vmatprep.subr.mxu0 0.0
      %628 = vmatpush1.msra.mxu0 0.0
      %629 = vmatprep.subr.mxu0 0.0
      %630 = vmatpush1.msra.mxu0 0.0
      %631 = vmatprep.subr.mxu0 0.0
      %632 = vmatpush1.msra.mxu0 0.0
      %633 = vmatprep.subr.mxu0 0.0
      %634 = vmatpush1.msra.mxu0 0.0
      %635 = vmatprep.subr.mxu0 0.0
      %636 = vmatpush1.msra.mxu0 0.0
      %637 = vmatprep.subr.mxu0 0.0
      %638 = vmatpush1.msra.mxu0 0.0
      %639 = vmatprep.subr.mxu0 0.0
      %640 = vmatpush1.msra.mxu0 0.0
      %641 = vmatprep.subr.mxu0 0.0
      %642 = vmatpush1.msra.mxu0 0.0
      %643 = vmatprep.subr.mxu0 0.0
      %644 = vmatpush1.msra.mxu0 0.0
      %645 = vmatprep.subr.mxu0 0.0
      %646 = vmatpush1.msra.mxu0 0.0
      %647 = vmatprep.subr.mxu0 0.0
      %648 = vmatpush1.msra.mxu0 0.0
      %649 = vmatprep.subr.mxu0 0.0
      %650 = vmatpush1.msra.mxu0 0.0
      %651 = vmatprep.subr.mxu0 0.0
      %652 = vmatpush1.msra.mxu0 0.0
      %653 = vmatprep.subr.mxu0 0.0
      %654 = vmatpush1.msra.mxu0 0.0
      %655 = vmatprep.subr.mxu0 0.0
      %656 = vmatpush1.msra.mxu0 0.0
      %657 = vmatprep.subr.mxu0 0.0
      %658 = vmatpush1.msra.mxu0 0.0
      %659 = vmatprep.subr.mxu0 0.0
      %660 = vmatpush1.msra.mxu0 0.0
      %661 = vmatprep.subr.mxu0 0.0
      %662 = vmatpush1.msra.mxu0 0.0
      %663 = vmatprep.subr.mxu0 0.0
      %664 = vmatpush1.msra.mxu0 0.0
      %665 = vmatprep.subr.mxu0 0.0
      %666 = vmatpush1.msra.mxu0 0.0
      %667 = vmatprep.subr.mxu0 0.0
      %668 = vmatpush1.msra.mxu0 0.0
      %669 = vmatprep.subr.mxu0 0.0
      %670 = vmatpush1.msra.mxu0 0.0
      %671 = vmatprep.subr.mxu0 0.0
      %672 = vmatpush1.msra.mxu0 0.0
      %673 = vmatprep.subr.mxu0 0.0
      %674 = vmatpush1.msra.mxu0 0.0
      %675 = vmatprep.subr.mxu0 0.0
      %676 = vmatpush1.msra.mxu0 0.0
      %677 = vmatprep.mubr.f32.mxu0 0.0
      %678 = vmatmul.mubr.f32.gmra.mrb[0].mxu0 %v590
      %v679 = vpop.f32.mrb[0].mxu0
      %v680 = vadd.f32 %v551, %v679
      %v681 = vpop.f32.mrb[0].mxu0
      %v682 = vadd.f32 %v551, %v681
      %683 = vmatprep.mubr.f32.mxu0 0.0
      %684 = vmatmul.mubr.f32.gmra.mrb[0].mxu0 %v593
      %v685 = vpop.f32.mrb[0].mxu0
      %v686 = vadd.f32 %v556, %v685
      %v687 = vpop.f32.mrb[0].mxu0
      %v688 = vadd.f32 %v556, %v687
      %689 = vmatprep.mubr.f32.mxu0 0.0
      %690 = vmatmul.mubr.f32.gmra.mrb[0].mxu0 %v596
      %v691 = vpop.f32.mrb[0].mxu0
      %v692 = vadd.f32 %v561, %v691
      %v693 = vpop.f32.mrb[0].mxu0
      %v694 = vadd.f32 %v561, %v693
      %695 = vmatprep.mubr.f32.mxu0 0.0
      %696 = vmatmul.mubr.f32.gmra.mrb[0].mxu0 %v599
      %v697 = vpop.f32.mrb[0].mxu0
      %v698 = vadd.f32 %v566, %v697
      %v699 = vpop.f32.mrb[0].mxu0
      %v700 = vadd.f32 %v566, %v699
      %701 = vmatprep.mubr.f32.mxu0 0.0
      %702 = vmatmul.mubr.f32.gmra.mrb[0].mxu0 %v602
      %v703 = vpop.f32.mrb[0].mxu0
      %v704 = vadd.f32 %v571, %v703
      %v705 = vpop.f32.mrb[0].mxu0
      %v706 = vadd.f32 %v571, %v705
      %707 = vmatprep.mubr.f32.mxu0 0.0
      %708 = vmatmul.mubr.f32.gmra.mrb[0].mxu0 %v605
      %v709 = vpop.f32.mrb[0].mxu0
      %v710 = vadd.f32 %v576, %v709
      %v711 = vpop.f32.mrb[0].mxu0
      %v712 = vadd.f32 %v576, %v711
      %713 = vmatprep.mubr.f32.mxu0 0.0
      %714 = vmatmul.mubr.f32.gmra.mrb[0].mxu0 %v608
      %v715 = vpop.f32.mrb[0].mxu0
      %v716 = vadd.f32 %v581, %v715
      %v717 = vpop.f32.mrb[0].mxu0
      %v718 = vadd.f32 %v581, %v717
      %719 = vmatprep.mubr.f32.mxu0 0.0
      %720 = vmatmul.mubr.f32.gmra.mrb[0].mxu0 %v611
      %v721 = vpop.f32.mrb[0].mxu0
      %v722 = vadd.f32 %v586, %v721
      %v723 = vpop.f32.mrb[0].mxu0
      %v724 = vadd.f32 %v586, %v723
      %725 = vdwg.mxu0
      %727 = vset.pattern.permute.xlu0 0
      %728 = vperm.xlu0 %727, %v442
      %v729 = vpop.permute.xlu0 %728
      %732 = vset.pattern.permute.xlu0 0
      %733 = vperm.xlu0 %732, %v443
      %v734 = vpop.permute.xlu0 %733
      %737 = vset.pattern.permute.xlu0 0
      %738 = vperm.xlu0 %737, %v444
      %v739 = vpop.permute.xlu0 %738
      %742 = vset.pattern.permute.xlu0 0
      %743 = vperm.xlu0 %742, %v445
      %v744 = vpop.permute.xlu0 %743
      %747 = vset.pattern.permute.xlu0 0
      %748 = vperm.xlu0 %747, %v446
      %v749 = vpop.permute.xlu0 %748
      %752 = vset.pattern.permute.xlu0 0
      %753 = vperm.xlu0 %752, %v447
      %v754 = vpop.permute.xlu0 %753
      %757 = vset.pattern.permute.xlu0 0
      %758 = vperm.xlu0 %757, %v448
      %v759 = vpop.permute.xlu0 %758
      %762 = vset.pattern.permute.xlu0 0
      %763 = vperm.xlu0 %762, %v449
      %v764 = vpop.permute.xlu0 %763
      %v766 = vadd.f32 %v680, %v729
      %v767 = vadd.f32 %v682, %v729
      %v768 = vadd.f32 %v686, %v734
      %v769 = vadd.f32 %v688, %v734
      %v770 = vadd.f32 %v692, %v739
      %v771 = vadd.f32 %v694, %v739
      %v772 = vadd.f32 %v698, %v744
      %v773 = vadd.f32 %v700, %v744
      %v774 = vadd.f32 %v704, %v749
      %v775 = vadd.f32 %v706, %v749
      %v776 = vadd.f32 %v710, %v754
      %v777 = vadd.f32 %v712, %v754
      %v778 = vadd.f32 %v716, %v759
      %v779 = vadd.f32 %v718, %v759
      %v780 = vadd.f32 %v722, %v764
      %v781 = vadd.f32 %v724, %v764
      %v782 = vxor.u32 %v766, 2147483648
      %v783 = vxor.u32 %v767, 2147483648
      %v784 = vxor.u32 %v768, 2147483648
      %v785 = vxor.u32 %v769, 2147483648
      %v786 = vxor.u32 %v770, 2147483648
      %v787 = vxor.u32 %v771, 2147483648
      %v788 = vxor.u32 %v772, 2147483648
      %v789 = vxor.u32 %v773, 2147483648
      %v790 = vxor.u32 %v774, 2147483648
      %v791 = vxor.u32 %v775, 2147483648
      %v792 = vxor.u32 %v776, 2147483648
      %v793 = vxor.u32 %v777, 2147483648
      %v794 = vxor.u32 %v778, 2147483648
      %v795 = vxor.u32 %v779, 2147483648
      %v796 = vxor.u32 %v780, 2147483648
      %v797 = vxor.u32 %v781, 2147483648
      %v798 = vmul.f32 %v782, 1.442695
      %v799 = vpow.pop %v798
      %v800 = vmul.f32 %v783, 1.442695
      %v801 = vpow.pop %v800
      %v802 = vmul.f32 %v784, 1.442695
      %v803 = vpow.pop %v802
      %v804 = vmul.f32 %v785, 1.442695
      %v805 = vpow.pop %v804
      %v806 = vmul.f32 %v786, 1.442695
      %v807 = vpow.pop %v806
      %v808 = vmul.f32 %v787, 1.442695
      %v809 = vpow.pop %v808
      %v810 = vmul.f32 %v788, 1.442695
      %v811 = vpow.pop %v810
      %v812 = vmul.f32 %v789, 1.442695
      %v813 = vpow.pop %v812
      %v814 = vmul.f32 %v790, 1.442695
      %v815 = vpow.pop %v814
      %v816 = vmul.f32 %v791, 1.442695
      %v817 = vpow.pop %v816
      %v818 = vmul.f32 %v792, 1.442695
      %v819 = vpow.pop %v818
      %v820 = vmul.f32 %v793, 1.442695
      %v821 = vpow.pop %v820
      %v822 = vmul.f32 %v794, 1.442695
      %v823 = vpow.pop %v822
      %v824 = vmul.f32 %v795, 1.442695
      %v825 = vpow.pop %v824
      %v826 = vmul.f32 %v796, 1.442695
      %v827 = vpow.pop %v826
      %v828 = vmul.f32 %v797, 1.442695
      %v829 = vpow.pop %v828
      %v830 = vadd.f32 %v799, 1.0
      %v831 = vadd.f32 %v801, 1.0
      %v832 = vadd.f32 %v803, 1.0
      %v833 = vadd.f32 %v805, 1.0
      %v834 = vadd.f32 %v807, 1.0
      %v835 = vadd.f32 %v809, 1.0
      %v836 = vadd.f32 %v811, 1.0
      %v837 = vadd.f32 %v813, 1.0
      %v838 = vadd.f32 %v815, 1.0
      %v839 = vadd.f32 %v817, 1.0
      %v840 = vadd.f32 %v819, 1.0
      %v841 = vadd.f32 %v821, 1.0
      %v842 = vadd.f32 %v823, 1.0
      %v843 = vadd.f32 %v825, 1.0
      %v844 = vadd.f32 %v827, 1.0
      %v845 = vadd.f32 %v829, 1.0
      %v846 = vrcp.pop %v830
      %v847 = vmul.f32 1.0, %v846
      %v848 = vrcp.pop %v831
      %v849 = vmul.f32 1.0, %v848
      %v850 = vrcp.pop %v832
      %v851 = vmul.f32 1.0, %v850
      %v852 = vrcp.pop %v833
      %v853 = vmul.f32 1.0, %v852
      %v854 = vrcp.pop %v834
      %v855 = vmul.f32 1.0, %v854
      %v856 = vrcp.pop %v835
      %v857 = vmul.f32 1.0, %v856
      %v858 = vrcp.pop %v836
      %v859 = vmul.f32 1.0, %v858
      %v860 = vrcp.pop %v837
      %v861 = vmul.f32 1.0, %v860
      %v862 = vrcp.pop %v838
      %v863 = vmul.f32 1.0, %v862
      %v864 = vrcp.pop %v839
      %v865 = vmul.f32 1.0, %v864
      %v866 = vrcp.pop %v840
      %v867 = vmul.f32 1.0, %v866
      %v868 = vrcp.pop %v841
      %v869 = vmul.f32 1.0, %v868
      %v870 = vrcp.pop %v842
      %v871 = vmul.f32 1.0, %v870
      %v872 = vrcp.pop %v843
      %v873 = vmul.f32 1.0, %v872
      %v874 = vrcp.pop %v844
      %v875 = vmul.f32 1.0, %v874
      %v876 = vrcp.pop %v845
      %v877 = vmul.f32 1.0, %v876
      %v878 = vmul.f32 %v374, %v847
      %v879 = vmul.f32 %v375, %v849
      %v880 = vmul.f32 %v376, %v851
      %v881 = vmul.f32 %v377, %v853
      %v882 = vmul.f32 %v378, %v855
      %v883 = vmul.f32 %v379, %v857
      %v884 = vmul.f32 %v380, %v859
      %v885 = vmul.f32 %v381, %v861
      %v886 = vmul.f32 %v382, %v863
      %v887 = vmul.f32 %v383, %v865
      %v888 = vmul.f32 %v384, %v867
      %v889 = vmul.f32 %v385, %v869
      %v890 = vmul.f32 %v386, %v871
      %v891 = vmul.f32 %v387, %v873
      %v892 = vmul.f32 %v388, %v875
      %v893 = vmul.f32 %v389, %v877
      %v894 = vsub.f32 1.0, %v847
      %v895 = vsub.f32 1.0, %v849
      %v896 = vsub.f32 1.0, %v851
      %v897 = vsub.f32 1.0, %v853
      %v898 = vsub.f32 1.0, %v855
      %v899 = vsub.f32 1.0, %v857
      %v900 = vsub.f32 1.0, %v859
      %v901 = vsub.f32 1.0, %v861
      %v902 = vsub.f32 1.0, %v863
      %v903 = vsub.f32 1.0, %v865
      %v904 = vsub.f32 1.0, %v867
      %v905 = vsub.f32 1.0, %v869
      %v906 = vsub.f32 1.0, %v871
      %v907 = vsub.f32 1.0, %v873
      %v908 = vsub.f32 1.0, %v875
      %v909 = vsub.f32 1.0, %v877
      %v910 = vmul.f32 %v390, %v894
      %v911 = vmul.f32 %v391, %v895
      %v912 = vmul.f32 %v392, %v896
      %v913 = vmul.f32 %v393, %v897
      %v914 = vmul.f32 %v394, %v898
      %v915 = vmul.f32 %v395, %v899
      %v916 = vmul.f32 %v396, %v900
      %v917 = vmul.f32 %v397, %v901
      %v918 = vmul.f32 %v398, %v902
      %v919 = vmul.f32 %v399, %v903
      %v920 = vmul.f32 %v400, %v904
      %v921 = vmul.f32 %v401, %v905
      %v922 = vmul.f32 %v402, %v906
      %v923 = vmul.f32 %v403, %v907
      %v924 = vmul.f32 %v404, %v908
      %v925 = vmul.f32 %v405, %v909
      %v926 = vadd.f32 %v878, %v910
      %v927 = vadd.f32 %v879, %v911
      %v928 = vadd.f32 %v880, %v912
      %v929 = vadd.f32 %v881, %v913
      %v930 = vadd.f32 %v882, %v914
      %v931 = vadd.f32 %v883, %v915
      %v932 = vadd.f32 %v884, %v916
      %v933 = vadd.f32 %v885, %v917
      %v934 = vadd.f32 %v886, %v918
      %v935 = vadd.f32 %v887, %v919
      %v936 = vadd.f32 %v888, %v920
      %v937 = vadd.f32 %v889, %v921
      %v938 = vadd.f32 %v890, %v922
      %v939 = vadd.f32 %v891, %v923
      %v940 = vadd.f32 %v892, %v924
      %v941 = vadd.f32 %v893, %v925
      %942 = vst [vmem:[%s372] sm:$0xff] %v926
      %943 = vst [vmem:[%s372 + $0x8] sm:$0xff] %v927
      %944 = vst [vmem:[%s372 + $0x10] sm:$0xff] %v928
      %945 = vst [vmem:[%s372 + $0x18] sm:$0xff] %v929
      %946 = vst [vmem:[%s372 + $0x20] sm:$0xff] %v930
      %947 = vst [vmem:[%s372 + $0x28] sm:$0xff] %v931
      %948 = vst [vmem:[%s372 + $0x30] sm:$0xff] %v932
      %949 = vst [vmem:[%s372 + $0x38] sm:$0xff] %v933
      %950 = vst [vmem:[%s372 + $0x40] sm:$0xff] %v934
      %951 = vst [vmem:[%s372 + $0x48] sm:$0xff] %v935
      %952 = vst [vmem:[%s372 + $0x50] sm:$0xff] %v936
      %953 = vst [vmem:[%s372 + $0x58] sm:$0xff] %v937
      %954 = vst [vmem:[%s372 + $0x60] sm:$0xff] %v938
      %955 = vst [vmem:[%s372 + $0x68] sm:$0xff] %v939
      %956 = vst [vmem:[%s372 + $0x70] sm:$0xff] %v940
      %957 = vst [vmem:[%s372 + $0x78] sm:$0xff] %v941
      %s958 = smul.u32 2, %s23
      %p959 = scmp.lt.s32.totalorder %s22, 1
      %s960 = scalar_select %p959, %s22, 1
      %p961 = scmp.lt.s32.totalorder %s958, 1
      %s962 = scalar_select %p961, %s958, 1
      %s963 = smul.addr %s960, 16
      %s964 = sadd.s32 %s962, %s963
      %s965 = smul.addr %s964, 8
      %s966 = scalar_lea.vmem %s7, %s965
      // Predicated region
      $region49: #{iaff_forward.2} parent=47 // pred_check
        %p967 = pneg %p216
      $region50: #{iaff_forward.2} parent=47 // pred_check_branch
        %969 = sbr.rel (%p967) target = $region52
      $region51: #{iaff_forward.2} parent=47 // pred_region
        %s970 = smul.u32 2, %s23
      $region52: #{iaff_forward.2} parent=47 // pred_fallthru
        _
    $region48: #{iaff_forward.2} parent=5 // pred_fallthru
      _
    %p971 = scmp.le.s32.totalorder 2, %s13
    // Predicated region
    $region53: #{iaff_forward.2} parent=5 // pred_check
      %p972 = pneg %p971
    $region54: #{iaff_forward.2} parent=5 // pred_check_branch
      %974 = sbr.rel (%p972) target = $region56
    $region55: #{iaff_forward.2} parent=5 // pred_region
      %s975 = ssub.s32 %s13, 2
      // Predicated region
      $region57: #{iaff_forward.2} parent=55 // pred_check
        %p976 = pneg %p222
      $region58: #{iaff_forward.2} parent=55 // pred_check_branch
        %978 = sbr.rel (%p976) target = $region60
      $region59: #{iaff_forward.2} parent=55 // pred_region
        %s979 = smul.u32 2, %s25
        %p980 = scmp.lt.s32.totalorder %s24, 1
        %s981 = scalar_select %p980, %s24, 1
        %p982 = scmp.lt.s32.totalorder %s979, 1
        %s983 = scalar_select %p982, %s979, 1
        %s984 = smul.addr %s981, 16
        %s985 = sadd.s32 %s983, %s984
        %s986 = smul.addr %s985, 8
        %s987 = scalar_lea.vmem %s7, %s986
      $region60: #{iaff_forward.2} parent=55 // pred_fallthru
        _
    $region56: #{iaff_forward.2} parent=5 // pred_fallthru
      _
  $region6: #{iaff_forward.2} parent=0 // loop_footer
    %s17 = sadd.s32 1, %s13
  $region7: #{iaff_forward.2} parent=0 // loop_footer_branch
    %12 = sbr.rel target = $region3
  $region8: #{iaff_forward.2} parent=0 // loop_exit
    _

// kernel: iaff_forward.3
$region0: #{iaff_forward.3}
  #allocation0 [shape = 'u32[]', space=smem, size = 0x4, offset = 0x4, fixed_abs, tag = 'smem constant byte address 0x4 - core index']
  #allocation1 [shape = 'u32[144,128]{1,0:T(1,128)}', space=vmem, size = 0x12000, scoped, tag = 'internal scratch']
  %s0 = inlined_call_operand.vmem [shape: f32[2,64,256], index: 0, kind: input, shape index: {}]
  %s1 = inlined_call_operand.vmem [shape: f32[2,64,256], index: 1, kind: input, shape index: {}]
  %s2 = inlined_call_operand.vmem [shape: f32[2,64,256], index: 2, kind: input, shape index: {}]
  %s3 = inlined_call_operand.vmem [shape: f32[16,64], index: 3, kind: input, shape index: {}]
  %s4 = inlined_call_operand.vmem [shape: f32[16,1], index: 4, kind: input, shape index: {}]
  %s5 = inlined_call_operand.vmem [shape: f32[64,16], index: 5, kind: input, shape index: {}]
  %s6 = inlined_call_operand.vmem [shape: f32[64,1], index: 6, kind: input, shape index: {}]
  %s7 = inlined_call_operand.vmem [shape: f32[2,64,1], index: 7, kind: input, shape index: {}]
  %s8 = inlined_call_operand.vmem [shape: f32[2,64,256], index: 8, kind: output, shape index: {}]
  %s9 = sld [smem:[#allocation0]]
  $region65: #{iaff_forward.3} parent=0
    _
  %s11 = ssub.s32 1, %s9
  %s12 = scalar_select 0, %s11, %s9
  loop: start=0, step=1, limit=4
  $region2: #{iaff_forward.3} parent=0 // loop_pre_header
    _
  $region3: #{iaff_forward.3} parent=0 // loop_header
    %s14 = sphi 0, %s18
    %p15 = scmp.ge.s32.totalorder %s14, 4
    %s21 = sphi 0, %s33
    %s22 = sphi 0, %s29
    %s23 = sphi 0, %s21
    %s24 = sphi 0, %s22
    %s25 = sphi 0, %s23
    %s26 = sphi 0, %s24
    %s38 = sphi 0, %s40
    %s41 = sphi 0, %s38
    %s42 = sphi 0, %s41
    %s58 = sphi 0, %s42
    %s66 = sphi 0, %s68
    %s69 = sphi 0, %s66
    %s70 = sphi 0, %s69
    %s86 = sphi 0, %s70
    %s94 = sphi 0, %s96
    %s97 = sphi 0, %s94
    %s98 = sphi 0, %s97
    %s114 = sphi 0, %s98
    %s118 = sphi 0, %s118
    %s120 = sphi 0, %s118
    %s121 = sphi 0, %s120
    %s135 = sphi 0, %s121
    %s139 = sphi 0, %s139
    %s141 = sphi 0, %s139
    %s142 = sphi 0, %s141
    %s156 = sphi 0, %s142
    %s160 = sphi 0, %s160
    %s162 = sphi 0, %s160
    %s163 = sphi 0, %s162
    %s177 = sphi 0, %s163
    %s181 = sphi 0, %s181
    %s183 = sphi 0, %s181
    %s184 = sphi 0, %s183
    %s198 = sphi 0, %s184
    %s204 = sphi 0, %s206
    %s207 = sphi 0, %s204
    %s208 = sphi 0, %s207
    %s224 = sphi 0, %s208
    %s232 = sphi 0, %s234
    %s235 = sphi 0, %s232
    %s236 = sphi 0, %s235
    %s252 = sphi 0, %s236
  $region4: #{iaff_forward.3} parent=0 // loop_header_branch
    %17 = sbr.rel (%p15) target = $region8
  $region5: #{iaff_forward.3} parent=0 // loop_body
    %s19 = ssub.s32 %s14, 1
    %s20 = ssub.s32 %s14, 2
    %s27 = sadd.s32 1, %s22
    %p28 = scmp.ge.s32.totalorder %s27, 1
    %s29 = scalar_select %p28, 0, %s27
    %s30 = sadd.s32 1, %s21
    %s31 = scalar_select %p28, %s30, %s21
    %p32 = scmp.ge.s32.totalorder %s31, 2
    %s33 = scalar_select %p32, 0, %s31
    %s34 = ssub.s32 %s21, %s33
    %s35 = ssub.s32 %s22, %s29
    %s36 = sor.u32 %s34, %s35
    %p37 = scmp.eq.s32.totalorder %s36, 0
    %s39 = sadd.s32 %s38, 1
    %s40 = scalar_select %p37, %s38, %s39
    %p43 = pneg %p37
    %p44 = scmp.eq.s32.totalorder %s14, 1
    %p45 = por %p43, %p44
    %p46 = scmp.ne.s32.totalorder %s38, %s41
    %p47 = scmp.eq.s32.totalorder %s14, 0
    %p48 = por %p46, %p47
    %p49 = scmp.ne.s32.totalorder %s38, %s41
    %p50 = scmp.eq.s32.totalorder %s19, 1
    %p51 = por %p49, %p50
    %p52 = scmp.ne.s32.totalorder %s41, %s42
    %p53 = scmp.eq.s32.totalorder %s19, 0
    %p54 = por %p52, %p53
    %p55 = scmp.ne.s32.totalorder %s41, %s42
    %p56 = scmp.eq.s32.totalorder %s20, 1
    %p57 = por %p55, %p56
    %p59 = scmp.ne.s32.totalorder %s42, %s58
    %p60 = scmp.eq.s32.totalorder %s20, 0
    %p61 = por %p59, %p60
    %s62 = ssub.s32 %s21, %s33
    %s63 = ssub.s32 %s22, %s29
    %s64 = sor.u32 %s62, %s63
    %p65 = scmp.eq.s32.totalorder %s64, 0
    %s67 = sadd.s32 %s66, 1
    %s68 = scalar_select %p65, %s66, %s67
    %p71 = pneg %p65
    %p72 = scmp.eq.s32.totalorder %s14, 1
    %p73 = por %p71, %p72
    %p74 = scmp.ne.s32.totalorder %s66, %s69
    %p75 = scmp.eq.s32.totalorder %s14, 0
    %p76 = por %p74, %p75
    %p77 = scmp.ne.s32.totalorder %s66, %s69
    %p78 = scmp.eq.s32.totalorder %s19, 1
    %p79 = por %p77, %p78
    %p80 = scmp.ne.s32.totalorder %s69, %s70
    %p81 = scmp.eq.s32.totalorder %s19, 0
    %p82 = por %p80, %p81
    %p83 = scmp.ne.s32.totalorder %s69, %s70
    %p84 = scmp.eq.s32.totalorder %s20, 1
    %p85 = por %p83, %p84
    %p87 = scmp.ne.s32.totalorder %s70, %s86
    %p88 = scmp.eq.s32.totalorder %s20, 0
    %p89 = por %p87, %p88
    %s90 = ssub.s32 %s21, %s33
    %s91 = ssub.s32 %s22, %s29
    %s92 = sor.u32 %s90, %s91
    %p93 = scmp.eq.s32.totalorder %s92, 0
    %s95 = sadd.s32 %s94, 1
    %s96 = scalar_select %p93, %s94, %s95
    %p99 = pneg %p93
    %p100 = scmp.eq.s32.totalorder %s14, 1
    %p101 = por %p99, %p100
    %p102 = scmp.ne.s32.totalorder %s94, %s97
    %p103 = scmp.eq.s32.totalorder %s14, 0
    %p104 = por %p102, %p103
    %p105 = scmp.ne.s32.totalorder %s94, %s97
    %p106 = scmp.eq.s32.totalorder %s19, 1
    %p107 = por %p105, %p106
    %p108 = scmp.ne.s32.totalorder %s97, %s98
    %p109 = scmp.eq.s32.totalorder %s19, 0
    %p110 = por %p108, %p109
    %p111 = scmp.ne.s32.totalorder %s97, %s98
    %p112 = scmp.eq.s32.totalorder %s20, 1
    %p113 = por %p111, %p112
    %p115 = scmp.ne.s32.totalorder %s98, %s114
    %p116 = scmp.eq.s32.totalorder %s20, 0
    %p117 = por %p115, %p116
    %s119 = sadd.s32 %s118, 1
    %p122 = scmp.eq.s32.totalorder %s14, 1
    %p123 = scmp.ne.s32.totalorder %s118, %s120
    %p124 = scmp.eq.s32.totalorder %s14, 0
    %p125 = por %p123, %p124
    %p126 = scmp.ne.s32.totalorder %s118, %s120
    %p127 = scmp.eq.s32.totalorder %s19, 1
    %p128 = por %p126, %p127
    %p129 = scmp.ne.s32.totalorder %s120, %s121
    %p130 = scmp.eq.s32.totalorder %s19, 0
    %p131 = por %p129, %p130
    %p132 = scmp.ne.s32.totalorder %s120, %s121
    %p133 = scmp.eq.s32.totalorder %s20, 1
    %p134 = por %p132, %p133
    %p136 = scmp.ne.s32.totalorder %s121, %s135
    %p137 = scmp.eq.s32.totalorder %s20, 0
    %p138 = por %p136, %p137
    %s140 = sadd.s32 %s139, 1
    %p143 = scmp.eq.s32.totalorder %s14, 1
    %p144 = scmp.ne.s32.totalorder %s139, %s141
    %p145 = scmp.eq.s32.totalorder %s14, 0
    %p146 = por %p144, %p145
    %p147 = scmp.ne.s32.totalorder %s139, %s141
    %p148 = scmp.eq.s32.totalorder %s19, 1
    %p149 = por %p147, %p148
    %p150 = scmp.ne.s32.totalorder %s141, %s142
    %p151 = scmp.eq.s32.totalorder %s19, 0
    %p152 = por %p150, %p151
    %p153 = scmp.ne.s32.totalorder %s141, %s142
    %p154 = scmp.eq.s32.totalorder %s20, 1
    %p155 = por %p153, %p154
    %p157 = scmp.ne.s32.totalorder %s142, %s156
    %p158 = scmp.eq.s32.totalorder %s20, 0
    %p159 = por %p157, %p158
    %s161 = sadd.s32 %s160, 1
    %p164 = scmp.eq.s32.totalorder %s14, 1
    %p165 = scmp.ne.s32.totalorder %s160, %s162
    %p166 = scmp.eq.s32.totalorder %s14, 0
    %p167 = por %p165, %p166
    %p168 = scmp.ne.s32.totalorder %s160, %s162
    %p169 = scmp.eq.s32.totalorder %s19, 1
    %p170 = por %p168, %p169
    %p171 = scmp.ne.s32.totalorder %s162, %s163
    %p172 = scmp.eq.s32.totalorder %s19, 0
    %p173 = por %p171, %p172
    %p174 = scmp.ne.s32.totalorder %s162, %s163
    %p175 = scmp.eq.s32.totalorder %s20, 1
    %p176 = por %p174, %p175
    %p178 = scmp.ne.s32.totalorder %s163, %s177
    %p179 = scmp.eq.s32.totalorder %s20, 0
    %p180 = por %p178, %p179
    %s182 = sadd.s32 %s181, 1
    %p185 = scmp.eq.s32.totalorder %s14, 1
    %p186 = scmp.ne.s32.totalorder %s181, %s183
    %p187 = scmp.eq.s32.totalorder %s14, 0
    %p188 = por %p186, %p187
    %p189 = scmp.ne.s32.totalorder %s181, %s183
    %p190 = scmp.eq.s32.totalorder %s19, 1
    %p191 = por %p189, %p190
    %p192 = scmp.ne.s32.totalorder %s183, %s184
    %p193 = scmp.eq.s32.totalorder %s19, 0
    %p194 = por %p192, %p193
    %p195 = scmp.ne.s32.totalorder %s183, %s184
    %p196 = scmp.eq.s32.totalorder %s20, 1
    %p197 = por %p195, %p196
    %p199 = scmp.ne.s32.totalorder %s184, %s198
    %p200 = scmp.eq.s32.totalorder %s20, 0
    %p201 = por %p199, %p200
    %s202 = ssub.s32 %s21, %s33
    %p203 = scmp.eq.s32.totalorder %s202, 0
    %s205 = sadd.s32 %s204, 1
    %s206 = scalar_select %p203, %s204, %s205
    %p209 = pneg %p203
    %p210 = scmp.eq.s32.totalorder %s14, 1
    %p211 = por %p209, %p210
    %p212 = scmp.ne.s32.totalorder %s204, %s207
    %p213 = scmp.eq.s32.totalorder %s14, 0
    %p214 = por %p212, %p213
    %p215 = scmp.ne.s32.totalorder %s204, %s207
    %p216 = scmp.eq.s32.totalorder %s19, 1
    %p217 = por %p215, %p216
    %p218 = scmp.ne.s32.totalorder %s207, %s208
    %p219 = scmp.eq.s32.totalorder %s19, 0
    %p220 = por %p218, %p219
    %p221 = scmp.ne.s32.totalorder %s207, %s208
    %p222 = scmp.eq.s32.totalorder %s20, 1
    %p223 = por %p221, %p222
    %p225 = scmp.ne.s32.totalorder %s208, %s224
    %p226 = scmp.eq.s32.totalorder %s20, 0
    %p227 = por %p225, %p226
    %s228 = ssub.s32 %s21, %s33
    %s229 = ssub.s32 %s22, %s29
    %s230 = sor.u32 %s228, %s229
    %p231 = scmp.eq.s32.totalorder %s230, 0
    %s233 = sadd.s32 %s232, 1
    %s234 = scalar_select %p231, %s232, %s233
    %p237 = pneg %p231
    %p238 = scmp.eq.s32.totalorder %s14, 1
    %p239 = por %p237, %p238
    %p240 = scmp.ne.s32.totalorder %s232, %s235
    %p241 = scmp.eq.s32.totalorder %s14, 0
    %p242 = por %p240, %p241
    %p243 = scmp.ne.s32.totalorder %s232, %s235
    %p244 = scmp.eq.s32.totalorder %s19, 1
    %p245 = por %p243, %p244
    %p246 = scmp.ne.s32.totalorder %s235, %s236
    %p247 = scmp.eq.s32.totalorder %s19, 0
    %p248 = por %p246, %p247
    %p249 = scmp.ne.s32.totalorder %s235, %s236
    %p250 = scmp.eq.s32.totalorder %s20, 1
    %p251 = por %p249, %p250
    %p253 = scmp.ne.s32.totalorder %s236, %s252
    %p254 = scmp.eq.s32.totalorder %s20, 0
    %p255 = por %p253, %p254
    %p256 = scmp.le.s32.totalorder 1, %s14
    %p257 = scmp.lt.s32.totalorder %s14, 3
    %p258 = pnand %p256, %p257
    %p259 = pneg %p258
    // Predicated region
    $region9: #{iaff_forward.3} parent=5 // pred_check
      _
    $region10: #{iaff_forward.3} parent=5 // pred_check_branch
      %261 = sbr.rel (%p258) target = $region12
    $region11: #{iaff_forward.3} parent=5 // pred_region
      %s262 = ssub.s32 %s14, 1
      // Predicated region
      $region13: #{iaff_forward.3} parent=11 // pred_check
        %p263 = pneg %p131
      $region14: #{iaff_forward.3} parent=11 // pred_check_branch
        %265 = sbr.rel (%p263) target = $region16
      $region15: #{iaff_forward.3} parent=11 // pred_region
        _
      $region16: #{iaff_forward.3} parent=11 // pred_fallthru
        _
      // Predicated region
      $region17: #{iaff_forward.3} parent=11 // pred_check
        %p266 = pneg %p152
      $region18: #{iaff_forward.3} parent=11 // pred_check_branch
        %268 = sbr.rel (%p266) target = $region20
      $region19: #{iaff_forward.3} parent=11 // pred_region
        _
      $region20: #{iaff_forward.3} parent=11 // pred_fallthru
        _
      // Predicated region
      $region21: #{iaff_forward.3} parent=11 // pred_check
        %p269 = pneg %p173
      $region22: #{iaff_forward.3} parent=11 // pred_check_branch
        %271 = sbr.rel (%p269) target = $region24
      $region23: #{iaff_forward.3} parent=11 // pred_region
        _
      $region24: #{iaff_forward.3} parent=11 // pred_fallthru
        _
      // Predicated region
      $region25: #{iaff_forward.3} parent=11 // pred_check
        %p272 = pneg %p194
      $region26: #{iaff_forward.3} parent=11 // pred_check_branch
        %274 = sbr.rel (%p272) target = $region28
      $region27: #{iaff_forward.3} parent=11 // pred_region
        _
      $region28: #{iaff_forward.3} parent=11 // pred_fallthru
        _
    $region12: #{iaff_forward.3} parent=5 // pred_fallthru
      _
    %p275 = scmp.lt.s32.totalorder %s14, 2
    // Predicated region
    $region29: #{iaff_forward.3} parent=5 // pred_check
      %p276 = pneg %p275
    $region30: #{iaff_forward.3} parent=5 // pred_check_branch
      %278 = sbr.rel (%p276) target = $region32
    $region31: #{iaff_forward.3} parent=5 // pred_region
      // Predicated region
      $region33: #{iaff_forward.3} parent=31 // pred_check
        %p279 = pneg %p48
      $region34: #{iaff_forward.3} parent=31 // pred_check_branch
        %281 = sbr.rel (%p279) target = $region36
      $region35: #{iaff_forward.3} parent=31 // pred_region
        %s282 = smul.u32 2, %s22
        %p283 = scmp.lt.s32.totalorder %s21, 1
        %s284 = scalar_select %p283, %s21, 1
        %p285 = scmp.lt.s32.totalorder %s282, 1
        %s286 = scalar_select %p285, %s282, 1
        %s287 = smul.addr %s284, 16
        %s288 = sadd.s32 %s286, %s287
        %s289 = smul.addr %s288, 8
        %s290 = scalar_lea.vmem %s0, %s289
        %s291 = smul.u32 2, %s22
      $region36: #{iaff_forward.3} parent=31 // pred_fallthru
        _
      // Predicated region
      $region37: #{iaff_forward.3} parent=31 // pred_check
        %p292 = pneg %p76
      $region38: #{iaff_forward.3} parent=31 // pred_check_branch
        %294 = sbr.rel (%p292) target = $region40
      $region39: #{iaff_forward.3} parent=31 // pred_region
        %s295 = smul.u32 2, %s22
        %p296 = scmp.lt.s32.totalorder %s21, 1
        %s297 = scalar_select %p296, %s21, 1
        %p298 = scmp.lt.s32.totalorder %s295, 1
        %s299 = scalar_select %p298, %s295, 1
        %s300 = smul.addr %s297, 16
        %s301 = sadd.s32 %s299, %s300
        %s302 = smul.addr %s301, 8
        %s303 = scalar_lea.vmem %s1, %s302
        %s304 = smul.u32 2, %s22
      $region40: #{iaff_forward.3} parent=31 // pred_fallthru
        _
      // Predicated region
      $region41: #{iaff_forward.3} parent=31 // pred_check
        %p305 = pneg %p104
      $region42: #{iaff_forward.3} parent=31 // pred_check_branch
        %307 = sbr.rel (%p305) target = $region44
      $region43: #{iaff_forward.3} parent=31 // pred_region
        %s308 = smul.u32 2, %s22
        %p309 = scmp.lt.s32.totalorder %s21, 1
        %s310 = scalar_select %p309, %s21, 1
        %p311 = scmp.lt.s32.totalorder %s308, 1
        %s312 = scalar_select %p311, %s308, 1
        %s313 = smul.addr %s310, 16
        %s314 = sadd.s32 %s312, %s313
        %s315 = smul.addr %s314, 8
        %s316 = scalar_lea.vmem %s2, %s315
        %s317 = smul.u32 2, %s22
      $region44: #{iaff_forward.3} parent=31 // pred_fallthru
        _
      // Predicated region
      $region45: #{iaff_forward.3} parent=31 // pred_check
        %p318 = pneg %p214
      $region46: #{iaff_forward.3} parent=31 // pred_check_branch
        %320 = sbr.rel (%p318) target = $region48
      $region47: #{iaff_forward.3} parent=31 // pred_region
        %p321 = scmp.lt.s32.totalorder %s21, 1
        %s322 = scalar_select %p321, %s21, 1
        %s323 = smul.addr %s322, 8
        %s324 = smul.addr %s323, 8
        %s325 = scalar_lea.vmem %s7, %s324
      $region48: #{iaff_forward.3} parent=31 // pred_fallthru
        _
    $region32: #{iaff_forward.3} parent=5 // pred_fallthru
      _
    %p326 = scmp.le.s32.totalorder 1, %s14
    %p327 = scmp.lt.s32.totalorder %s14, 3
    %p328 = pnand %p326, %p327
    %p329 = pneg %p328
    // Predicated region
    $region49: #{iaff_forward.3} parent=5 // pred_check
      _
    $region50: #{iaff_forward.3} parent=5 // pred_check_branch
      %331 = sbr.rel (%p328) target = $region52
    $region51: #{iaff_forward.3} parent=5 // pred_region
      %s332 = ssub.s32 %s14, 1
      %s333 = smul.u32 2, %s24
      %p334 = scmp.lt.s32.totalorder %s23, 1
      %s335 = scalar_select %p334, %s23, 1
      %p336 = scmp.lt.s32.totalorder %s333, 1
      %s337 = scalar_select %p336, %s333, 1
      %s338 = smul.addr %s335, 16
      %s339 = sadd.s32 %s337, %s338
      %s340 = smul.addr %s339, 8
      %s341 = scalar_lea.vmem %s0, %s340
      %p342 = pneg %p54
      %p343 = pneg %p51
      %s344 = smul.u32 2, %s24
      %p345 = scmp.lt.s32.totalorder %s23, 1
      %s346 = scalar_select %p345, %s23, 1
      %p347 = scmp.lt.s32.totalorder %s344, 1
      %s348 = scalar_select %p347, %s344, 1
      %s349 = smul.addr %s346, 16
      %s350 = sadd.s32 %s348, %s349
      %s351 = smul.addr %s350, 8
      %s352 = scalar_lea.vmem %s1, %s351
      %p353 = pneg %p82
      %p354 = pneg %p79
      %s355 = smul.u32 2, %s24
      %p356 = scmp.lt.s32.totalorder %s23, 1
      %s357 = scalar_select %p356, %s23, 1
      %p358 = scmp.lt.s32.totalorder %s355, 1
      %s359 = scalar_select %p358, %s355, 1
      %s360 = smul.addr %s357, 16
      %s361 = sadd.s32 %s359, %s360
      %s362 = smul.addr %s361, 8
      %s363 = scalar_lea.vmem %s2, %s362
      %p364 = pneg %p110
      %p365 = pneg %p107
      %p366 = pneg %p131
      %p367 = pneg %p128
      %p368 = pneg %p152
      %p369 = pneg %p149
      %p370 = pneg %p173
      %p371 = pneg %p170
      %p372 = pneg %p194
      %p373 = pneg %p191
      %p374 = scmp.lt.s32.totalorder %s23, 1
      %s375 = scalar_select %p374, %s23, 1
      %s376 = smul.addr %s375, 8
      %s377 = smul.addr %s376, 8
      %s378 = scalar_lea.vmem %s7, %s377
      %p379 = pneg %p220
      %p380 = pneg %p217
      %p381 = pneg %p248
      %p382 = pneg %p245
      %s383 = smul.u32 2, %s24
      %p384 = scmp.lt.s32.totalorder %s23, 1
      %s385 = scalar_select %p384, %s23, 1
      %p386 = scmp.lt.s32.totalorder %s383, 1
      %s387 = scalar_select %p386, %s383, 1
      %s388 = smul.addr %s385, 16
      %s389 = sadd.s32 %s387, %s388
      %s390 = smul.addr %s389, 8
      %s391 = scalar_lea.vmem %s8, %s390
      %s392 = smul.u32 2, %s24
      %p393 = scmp.lt.s32.totalorder %s23, 1
      %s394 = scalar_select %p393, %s23, 1
      %p395 = scmp.lt.s32.totalorder %s392, 1
      %s396 = scalar_select %p395, %s392, 1
      %s397 = smul.addr %s394, 16
      %s398 = sadd.s32 %s396, %s397
      %s399 = smul.addr %s398, 8
      %s400 = scalar_lea.vmem %s0, %s399
      %s401 = smul.u32 2, %s24
      %s402 = smul.u32 2, %s24
      %p403 = scmp.lt.s32.totalorder %s23, 1
      %s404 = scalar_select %p403, %s23, 1
      %p405 = scmp.lt.s32.totalorder %s402, 1
      %s406 = scalar_select %p405, %s402, 1
      %s407 = smul.addr %s404, 16
      %s408 = sadd.s32 %s406, %s407
      %s409 = smul.addr %s408, 8
      %s410 = scalar_lea.vmem %s1, %s409
      %s411 = smul.u32 2, %s24
      %s412 = smul.u32 2, %s24
      %p413 = scmp.lt.s32.totalorder %s23, 1
      %s414 = scalar_select %p413, %s23, 1
      %p415 = scmp.lt.s32.totalorder %s412, 1
      %s416 = scalar_select %p415, %s412, 1
      %s417 = smul.addr %s414, 16
      %s418 = sadd.s32 %s416, %s417
      %s419 = smul.addr %s418, 8
      %s420 = scalar_lea.vmem %s2, %s419
      %s421 = smul.u32 2, %s24
      %p422 = scmp.lt.s32.totalorder %s23, 1
      %s423 = scalar_select %p422, %s23, 1
      %s424 = smul.addr %s423, 8
      %s425 = smul.addr %s424, 8
      %s426 = scalar_lea.vmem %s7, %s425
      %s427 = smul.u32 2, %s24
      %p428 = scmp.lt.s32.totalorder %s23, 1
      %s429 = scalar_select %p428, %s23, 1
      %p430 = scmp.lt.s32.totalorder %s427, 1
      %s431 = scalar_select %p430, %s427, 1
      %s432 = smul.addr %s429, 16
      %s433 = sadd.s32 %s431, %s432
      %s434 = smul.addr %s433, 8
      %s435 = scalar_lea.vmem %s8, %s434
      %s436 = smul.u32 2, %s24
      %v437 = vld [vmem:[%s410] sm:$0xff]
      %v438 = vld [vmem:[%s410 + $0x8] sm:$0xff]
      %v439 = vld [vmem:[%s410 + $0x10] sm:$0xff]
      %v440 = vld [vmem:[%s410 + $0x18] sm:$0xff]
      %v441 = vld [vmem:[%s410 + $0x20] sm:$0xff]
      %v442 = vld [vmem:[%s410 + $0x28] sm:$0xff]
      %v443 = vld [vmem:[%s410 + $0x30] sm:$0xff]
      %v444 = vld [vmem:[%s410 + $0x38] sm:$0xff]
      %v445 = vld [vmem:[%s410 + $0x40] sm:$0xff]
      %v446 = vld [vmem:[%s410 + $0x48] sm:$0xff]
      %v447 = vld [vmem:[%s410 + $0x50] sm:$0xff]
      %v448 = vld [vmem:[%s410 + $0x58] sm:$0xff]
      %v449 = vld [vmem:[%s410 + $0x60] sm:$0xff]
      %v450 = vld [vmem:[%s410 + $0x68] sm:$0xff]
      %v451 = vld [vmem:[%s410 + $0x70] sm:$0xff]
      %v452 = vld [vmem:[%s410 + $0x78] sm:$0xff]
      %v453 = vld [vmem:[%s420] sm:$0xff]
      %v454 = vld [vmem:[%s420 + $0x8] sm:$0xff]
      %v455 = vld [vmem:[%s420 + $0x10] sm:$0xff]
      %v456 = vld [vmem:[%s420 + $0x18] sm:$0xff]
      %v457 = vld [vmem:[%s420 + $0x20] sm:$0xff]
      %v458 = vld [vmem:[%s420 + $0x28] sm:$0xff]
      %v459 = vld [vmem:[%s420 + $0x30] sm:$0xff]
      %v460 = vld [vmem:[%s420 + $0x38] sm:$0xff]
      %v461 = vld [vmem:[%s420 + $0x40] sm:$0xff]
      %v462 = vld [vmem:[%s420 + $0x48] sm:$0xff]
      %v463 = vld [vmem:[%s420 + $0x50] sm:$0xff]
      %v464 = vld [vmem:[%s420 + $0x58] sm:$0xff]
      %v465 = vld [vmem:[%s420 + $0x60] sm:$0xff]
      %v466 = vld [vmem:[%s420 + $0x68] sm:$0xff]
      %v467 = vld [vmem:[%s420 + $0x70] sm:$0xff]
      %v468 = vld [vmem:[%s420 + $0x78] sm:$0xff]
      %v469 = vld [vmem:[%s400] sm:$0xff]
      %v470 = vld [vmem:[%s400 + $0x8] sm:$0xff]
      %v471 = vld [vmem:[%s400 + $0x10] sm:$0xff]
      %v472 = vld [vmem:[%s400 + $0x18] sm:$0xff]
      %v473 = vld [vmem:[%s400 + $0x20] sm:$0xff]
      %v474 = vld [vmem:[%s400 + $0x28] sm:$0xff]
      %v475 = vld [vmem:[%s400 + $0x30] sm:$0xff]
      %v476 = vld [vmem:[%s400 + $0x38] sm:$0xff]
      %v477 = vld [vmem:[%s400 + $0x40] sm:$0xff]
      %v478 = vld [vmem:[%s400 + $0x48] sm:$0xff]
      %v479 = vld [vmem:[%s400 + $0x50] sm:$0xff]
      %v480 = vld [vmem:[%s400 + $0x58] sm:$0xff]
      %v481 = vld [vmem:[%s400 + $0x60] sm:$0xff]
      %v482 = vld [vmem:[%s400 + $0x68] sm:$0xff]
      %v483 = vld [vmem:[%s400 + $0x70] sm:$0xff]
      %v484 = vld [vmem:[%s400 + $0x78] sm:$0xff]
      %v485 = vld [vmem:[%s3] sm:$0xff]
      %v486 = vld [vmem:[%s3 + $0x8] sm:$0xff]
      %v487 = vld [vmem:[%s4] sm:$0xff]
      %v488 = vld [vmem:[%s4 + $0x8] sm:$0xff]
      %v489 = vld [vmem:[%s5] sm:$0xff]
      %v490 = vld [vmem:[%s5 + $0x8] sm:$0xff]
      %v491 = vld [vmem:[%s5 + $0x10] sm:$0xff]
      %v492 = vld [vmem:[%s5 + $0x18] sm:$0xff]
      %v493 = vld [vmem:[%s5 + $0x20] sm:$0xff]
      %v494 = vld [vmem:[%s5 + $0x28] sm:$0xff]
      %v495 = vld [vmem:[%s5 + $0x30] sm:$0xff]
      %v496 = vld [vmem:[%s5 + $0x38] sm:$0xff]
      %v497 = vld [vmem:[%s6] sm:$0xff]
      %v498 = vld [vmem:[%s6 + $0x8] sm:$0xff]
      %v499 = vld [vmem:[%s6 + $0x10] sm:$0xff]
      %v500 = vld [vmem:[%s6 + $0x18] sm:$0xff]
      %v501 = vld [vmem:[%s6 + $0x20] sm:$0xff]
      %v502 = vld [vmem:[%s6 + $0x28] sm:$0xff]
      %v503 = vld [vmem:[%s6 + $0x30] sm:$0xff]
      %v504 = vld [vmem:[%s6 + $0x38] sm:$0xff]
      %v505 = vld [vmem:[%s426] sm:$0xff]
      %v506 = vld [vmem:[%s426 + $0x8] sm:$0xff]
      %v507 = vld [vmem:[%s426 + $0x10] sm:$0xff]
      %v508 = vld [vmem:[%s426 + $0x18] sm:$0xff]
      %v509 = vld [vmem:[%s426 + $0x20] sm:$0xff]
      %v510 = vld [vmem:[%s426 + $0x28] sm:$0xff]
      %v511 = vld [vmem:[%s426 + $0x30] sm:$0xff]
      %v512 = vld [vmem:[%s426 + $0x38] sm:$0xff]
      %514 = vset.pattern.permute.xlu0 0
      %515 = vperm.xlu0 %514, %v487
      %v516 = vpop.permute.xlu0 %515
      %519 = vset.pattern.permute.xlu0 0
      %520 = vperm.xlu0 %519, %v488
      %v521 = vpop.permute.xlu0 %520
      %vm523 = vcmask 523264
      %v525 = vsel %vm523, %v485, 0
      %v528 = vsel %vm523, %v486, 0
      %530 = vmatprep.subr.mxu0 %v470
      %531 = vmatpush1.msra.mxu0 %v469
      %532 = vmatprep.subr.mxu0 %v472
      %533 = vmatpush1.msra.mxu0 %v471
      %534 = vmatprep.subr.mxu0 %v474
      %535 = vmatpush1.msra.mxu0 %v473
      %536 = vmatprep.subr.mxu0 %v476
      %537 = vmatpush1.msra.mxu0 %v475
      %538 = vmatprep.subr.mxu0 %v478
      %539 = vmatpush1.msra.mxu0 %v477
      %540 = vmatprep.subr.mxu0 %v480
      %541 = vmatpush1.msra.mxu0 %v479
      %542 = vmatprep.subr.mxu0 %v482
      %543 = vmatpush1.msra.mxu0 %v481
      %544 = vmatprep.subr.mxu0 %v484
      %545 = vmatpush1.msra.mxu0 %v483
      %546 = vmatprep.subr.mxu0 0.0
      %547 = vmatpush1.msra.mxu0 0.0
      %548 = vmatprep.subr.mxu0 0.0
      %549 = vmatpush1.msra.mxu0 0.0
      %550 = vmatprep.subr.mxu0 0.0
      %551 = vmatpush1.msra.mxu0 0.0
      %552 = vmatprep.subr.mxu0 0.0
      %553 = vmatpush1.msra.mxu0 0.0
      %554 = vmatprep.subr.mxu0 0.0
      %555 = vmatpush1.msra.mxu0 0.0
      %556 = vmatprep.subr.mxu0 0.0
      %557 = vmatpush1.msra.mxu0 0.0
      %558 = vmatprep.subr.mxu0 0.0
      %559 = vmatpush1.msra.mxu0 0.0
      %560 = vmatprep.subr.mxu0 0.0
      %561 = vmatpush1.msra.mxu0 0.0
      %562 = vmatprep.subr.mxu0 0.0
      %563 = vmatpush1.msra.mxu0 0.0
      %564 = vmatprep.subr.mxu0 0.0
      %565 = vmatpush1.msra.mxu0 0.0
      %566 = vmatprep.subr.mxu0 0.0
      %567 = vmatpush1.msra.mxu0 0.0
      %568 = vmatprep.subr.mxu0 0.0
      %569 = vmatpush1.msra.mxu0 0.0
      %570 = vmatprep.subr.mxu0 0.0
      %571 = vmatpush1.msra.mxu0 0.0
      %572 = vmatprep.subr.mxu0 0.0
      %573 = vmatpush1.msra.mxu0 0.0
      %574 = vmatprep.subr.mxu0 0.0
      %575 = vmatpush1.msra.mxu0 0.0
      %576 = vmatprep.subr.mxu0 0.0
      %577 = vmatpush1.msra.mxu0 0.0
      %578 = vmatprep.subr.mxu0 0.0
      %579 = vmatpush1.msra.mxu0 0.0
      %580 = vmatprep.subr.mxu0 0.0
      %581 = vmatpush1.msra.mxu0 0.0
      %582 = vmatprep.subr.mxu0 0.0
      %583 = vmatpush1.msra.mxu0 0.0
      %584 = vmatprep.subr.mxu0 0.0
      %585 = vmatpush1.msra.mxu0 0.0
      %586 = vmatprep.subr.mxu0 0.0
      %587 = vmatpush1.msra.mxu0 0.0
      %588 = vmatprep.subr.mxu0 0.0
      %589 = vmatpush1.msra.mxu0 0.0
      %590 = vmatprep.subr.mxu0 0.0
      %591 = vmatpush1.msra.mxu0 0.0
      %592 = vmatprep.subr.mxu0 0.0
      %593 = vmatpush1.msra.mxu0 0.0
      %594 = vmatprep.mubr.f32.mxu0 0.0
      %595 = vmatmul.mubr.f32.gmra.mrb[0].mxu0 %v525
      %v596 = vpop.f32.mrb[0].mxu0
      %v597 = vadd.f32 %v516, %v596
      %v598 = vpop.f32.mrb[0].mxu0
      %v599 = vadd.f32 %v516, %v598
      %600 = vmatprep.mubr.f32.mxu0 0.0
      %601 = vmatmul.mubr.f32.gmra.mrb[0].mxu0 %v528
      %v602 = vpop.f32.mrb[0].mxu0
      %v603 = vadd.f32 %v521, %v602
      %v604 = vpop.f32.mrb[0].mxu0
      %v605 = vadd.f32 %v521, %v604
      %606 = vdwg.mxu0
      %v607 = vmax.f32 %v597, 0.0
      %v608 = vmax.f32 %v599, 0.0
      %v609 = vmax.f32 %v603, 0.0
      %v610 = vmax.f32 %v605, 0.0
      %612 = vset.pattern.permute.xlu0 0
      %613 = vperm.xlu0 %612, %v497
      %v614 = vpop.permute.xlu0 %613
      %617 = vset.pattern.permute.xlu0 0
      %618 = vperm.xlu0 %617, %v498
      %v619 = vpop.permute.xlu0 %618
      %622 = vset.pattern.permute.xlu0 0
      %623 = vperm.xlu0 %622, %v499
      %v624 = vpop.permute.xlu0 %623
      %627 = vset.pattern.permute.xlu0 0
      %628 = vperm.xlu0 %627, %v500
      %v629 = vpop.permute.xlu0 %628
      %632 = vset.pattern.permute.xlu0 0
      %633 = vperm.xlu0 %632, %v501
      %v634 = vpop.permute.xlu0 %633
      %637 = vset.pattern.permute.xlu0 0
      %638 = vperm.xlu0 %637, %v502
      %v639 = vpop.permute.xlu0 %638
      %642 = vset.pattern.permute.xlu0 0
      %643 = vperm.xlu0 %642, %v503
      %v644 = vpop.permute.xlu0 %643
      %647 = vset.pattern.permute.xlu0 0
      %648 = vperm.xlu0 %647, %v504
      %v649 = vpop.permute.xlu0 %648
      %vm651 = vcmask 130048
      %v653 = vsel %vm651, %v489, 0
      %v656 = vsel %vm651, %v490, 0
      %v659 = vsel %vm651, %v491, 0
      %v662 = vsel %vm651, %v492, 0
      %v665 = vsel %vm651, %v493, 0
      %v668 = vsel %vm651, %v494, 0
      %v671 = vsel %vm651, %v495, 0
      %v674 = vsel %vm651, %v496, 0
      %676 = vmatprep.subr.mxu0 %v608
      %677 = vmatpush1.msra.mxu0 %v607
      %678 = vmatprep.subr.mxu0 %v610
      %679 = vmatpush1.msra.mxu0 %v609
      %680 = vmatprep.subr.mxu0 0.0
      %681 = vmatpush1.msra.mxu0 0.0
      %682 = vmatprep.subr.mxu0 0.0
      %683 = vmatpush1.msra.mxu0 0.0
      %684 = vmatprep.subr.mxu0 0.0
      %685 = vmatpush1.msra.mxu0 0.0
      %686 = vmatprep.subr.mxu0 0.0
      %687 = vmatpush1.msra.mxu0 0.0
      %688 = vmatprep.subr.mxu0 0.0
      %689 = vmatpush1.msra.mxu0 0.0
      %690 = vmatprep.subr.mxu0 0.0
      %691 = vmatpush1.msra.mxu0 0.0
      %692 = vmatprep.subr.mxu0 0.0
      %693 = vmatpush1.msra.mxu0 0.0
      %694 = vmatprep.subr.mxu0 0.0
      %695 = vmatpush1.msra.mxu0 0.0
      %696 = vmatprep.subr.mxu0 0.0
      %697 = vmatpush1.msra.mxu0 0.0
      %698 = vmatprep.subr.mxu0 0.0
      %699 = vmatpush1.msra.mxu0 0.0
      %700 = vmatprep.subr.mxu0 0.0
      %701 = vmatpush1.msra.mxu0 0.0
      %702 = vmatprep.subr.mxu0 0.0
      %703 = vmatpush1.msra.mxu0 0.0
      %704 = vmatprep.subr.mxu0 0.0
      %705 = vmatpush1.msra.mxu0 0.0
      %706 = vmatprep.subr.mxu0 0.0
      %707 = vmatpush1.msra.mxu0 0.0
      %708 = vmatprep.subr.mxu0 0.0
      %709 = vmatpush1.msra.mxu0 0.0
      %710 = vmatprep.subr.mxu0 0.0
      %711 = vmatpush1.msra.mxu0 0.0
      %712 = vmatprep.subr.mxu0 0.0
      %713 = vmatpush1.msra.mxu0 0.0
      %714 = vmatprep.subr.mxu0 0.0
      %715 = vmatpush1.msra.mxu0 0.0
      %716 = vmatprep.subr.mxu0 0.0
      %717 = vmatpush1.msra.mxu0 0.0
      %718 = vmatprep.subr.mxu0 0.0
      %719 = vmatpush1.msra.mxu0 0.0
      %720 = vmatprep.subr.mxu0 0.0
      %721 = vmatpush1.msra.mxu0 0.0
      %722 = vmatprep.subr.mxu0 0.0
      %723 = vmatpush1.msra.mxu0 0.0
      %724 = vmatprep.subr.mxu0 0.0
      %725 = vmatpush1.msra.mxu0 0.0
      %726 = vmatprep.subr.mxu0 0.0
      %727 = vmatpush1.msra.mxu0 0.0
      %728 = vmatprep.subr.mxu0 0.0
      %729 = vmatpush1.msra.mxu0 0.0
      %730 = vmatprep.subr.mxu0 0.0
      %731 = vmatpush1.msra.mxu0 0.0
      %732 = vmatprep.subr.mxu0 0.0
      %733 = vmatpush1.msra.mxu0 0.0
      %734 = vmatprep.subr.mxu0 0.0
      %735 = vmatpush1.msra.mxu0 0.0
      %736 = vmatprep.subr.mxu0 0.0
      %737 = vmatpush1.msra.mxu0 0.0
      %738 = vmatprep.subr.mxu0 0.0
      %739 = vmatpush1.msra.mxu0 0.0
      %740 = vmatprep.mubr.f32.mxu0 0.0
      %741 = vmatmul.mubr.f32.gmra.mrb[0].mxu0 %v653
      %v742 = vpop.f32.mrb[0].mxu0
      %v743 = vadd.f32 %v614, %v742
      %v744 = vpop.f32.mrb[0].mxu0
      %v745 = vadd.f32 %v614, %v744
      %746 = vmatprep.mubr.f32.mxu0 0.0
      %747 = vmatmul.mubr.f32.gmra.mrb[0].mxu0 %v656
      %v748 = vpop.f32.mrb[0].mxu0
      %v749 = vadd.f32 %v619, %v748
      %v750 = vpop.f32.mrb[0].mxu0
      %v751 = vadd.f32 %v619, %v750
      %752 = vmatprep.mubr.f32.mxu0 0.0
      %753 = vmatmul.mubr.f32.gmra.mrb[0].mxu0 %v659
      %v754 = vpop.f32.mrb[0].mxu0
      %v755 = vadd.f32 %v624, %v754
      %v756 = vpop.f32.mrb[0].mxu0
      %v757 = vadd.f32 %v624, %v756
      %758 = vmatprep.mubr.f32.mxu0 0.0
      %759 = vmatmul.mubr.f32.gmra.mrb[0].mxu0 %v662
      %v760 = vpop.f32.mrb[0].mxu0
      %v761 = vadd.f32 %v629, %v760
      %v762 = vpop.f32.mrb[0].mxu0
      %v763 = vadd.f32 %v629, %v762
      %764 = vmatprep.mubr.f32.mxu0 0.0
      %765 = vmatmul.mubr.f32.gmra.mrb[0].mxu0 %v665
      %v766 = vpop.f32.mrb[0].mxu0
      %v767 = vadd.f32 %v634, %v766
      %v768 = vpop.f32.mrb[0].mxu0
      %v769 = vadd.f32 %v634, %v768
      %770 = vmatprep.mubr.f32.mxu0 0.0
      %771 = vmatmul.mubr.f32.gmra.mrb[0].mxu0 %v668
      %v772 = vpop.f32.mrb[0].mxu0
      %v773 = vadd.f32 %v639, %v772
      %v774 = vpop.f32.mrb[0].mxu0
      %v775 = vadd.f32 %v639, %v774
      %776 = vmatprep.mubr.f32.mxu0 0.0
      %777 = vmatmul.mubr.f32.gmra.mrb[0].mxu0 %v671
      %v778 = vpop.f32.mrb[0].mxu0
      %v779 = vadd.f32 %v644, %v778
      %v780 = vpop.f32.mrb[0].mxu0
      %v781 = vadd.f32 %v644, %v780
      %782 = vmatprep.mubr.f32.mxu0 0.0
      %783 = vmatmul.mubr.f32.gmra.mrb[0].mxu0 %v674
      %v784 = vpop.f32.mrb[0].mxu0
      %v785 = vadd.f32 %v649, %v784
      %v786 = vpop.f32.mrb[0].mxu0
      %v787 = vadd.f32 %v649, %v786
      %788 = vdwg.mxu0
      %790 = vset.pattern.permute.xlu0 0
      %791 = vperm.xlu0 %790, %v505
      %v792 = vpop.permute.xlu0 %791
      %795 = vset.pattern.permute.xlu0 0
      %796 = vperm.xlu0 %795, %v506
      %v797 = vpop.permute.xlu0 %796
      %800 = vset.pattern.permute.xlu0 0
      %801 = vperm.xlu0 %800, %v507
      %v802 = vpop.permute.xlu0 %801
      %805 = vset.pattern.permute.xlu0 0
      %806 = vperm.xlu0 %805, %v508
      %v807 = vpop.permute.xlu0 %806
      %810 = vset.pattern.permute.xlu0 0
      %811 = vperm.xlu0 %810, %v509
      %v812 = vpop.permute.xlu0 %811
      %815 = vset.pattern.permute.xlu0 0
      %816 = vperm.xlu0 %815, %v510
      %v817 = vpop.permute.xlu0 %816
      %820 = vset.pattern.permute.xlu0 0
      %821 = vperm.xlu0 %820, %v511
      %v822 = vpop.permute.xlu0 %821
      %825 = vset.pattern.permute.xlu0 0
      %826 = vperm.xlu0 %825, %v512
      %v827 = vpop.permute.xlu0 %826
      %v829 = vadd.f32 %v743, %v792
      %v830 = vadd.f32 %v745, %v792
      %v831 = vadd.f32 %v749, %v797
      %v832 = vadd.f32 %v751, %v797
      %v833 = vadd.f32 %v755, %v802
      %v834 = vadd.f32 %v757, %v802
      %v835 = vadd.f32 %v761, %v807
      %v836 = vadd.f32 %v763, %v807
      %v837 = vadd.f32 %v767, %v812
      %v838 = vadd.f32 %v769, %v812
      %v839 = vadd.f32 %v773, %v817
      %v840 = vadd.f32 %v775, %v817
      %v841 = vadd.f32 %v779, %v822
      %v842 = vadd.f32 %v781, %v822
      %v843 = vadd.f32 %v785, %v827
      %v844 = vadd.f32 %v787, %v827
      %v845 = vxor.u32 %v829, 2147483648
      %v846 = vxor.u32 %v830, 2147483648
      %v847 = vxor.u32 %v831, 2147483648
      %v848 = vxor.u32 %v832, 2147483648
      %v849 = vxor.u32 %v833, 2147483648
      %v850 = vxor.u32 %v834, 2147483648
      %v851 = vxor.u32 %v835, 2147483648
      %v852 = vxor.u32 %v836, 2147483648
      %v853 = vxor.u32 %v837, 2147483648
      %v854 = vxor.u32 %v838, 2147483648
      %v855 = vxor.u32 %v839, 2147483648
      %v856 = vxor.u32 %v840, 2147483648
      %v857 = vxor.u32 %v841, 2147483648
      %v858 = vxor.u32 %v842, 2147483648
      %v859 = vxor.u32 %v843, 2147483648
      %v860 = vxor.u32 %v844, 2147483648
      %v861 = vmul.f32 %v845, 1.442695
      %v862 = vpow.pop %v861
      %v863 = vmul.f32 %v846, 1.442695
      %v864 = vpow.pop %v863
      %v865 = vmul.f32 %v847, 1.442695
      %v866 = vpow.pop %v865
      %v867 = vmul.f32 %v848, 1.442695
      %v868 = vpow.pop %v867
      %v869 = vmul.f32 %v849, 1.442695
      %v870 = vpow.pop %v869
      %v871 = vmul.f32 %v850, 1.442695
      %v872 = vpow.pop %v871
      %v873 = vmul.f32 %v851, 1.442695
      %v874 = vpow.pop %v873
      %v875 = vmul.f32 %v852, 1.442695
      %v876 = vpow.pop %v875
      %v877 = vmul.f32 %v853, 1.442695
      %v878 = vpow.pop %v877
      %v879 = vmul.f32 %v854, 1.442695
      %v880 = vpow.pop %v879
      %v881 = vmul.f32 %v855, 1.442695
      %v882 = vpow.pop %v881
      %v883 = vmul.f32 %v856, 1.442695
      %v884 = vpow.pop %v883
      %v885 = vmul.f32 %v857, 1.442695
      %v886 = vpow.pop %v885
      %v887 = vmul.f32 %v858, 1.442695
      %v888 = vpow.pop %v887
      %v889 = vmul.f32 %v859, 1.442695
      %v890 = vpow.pop %v889
      %v891 = vmul.f32 %v860, 1.442695
      %v892 = vpow.pop %v891
      %v893 = vadd.f32 %v862, 1.0
      %v894 = vadd.f32 %v864, 1.0
      %v895 = vadd.f32 %v866, 1.0
      %v896 = vadd.f32 %v868, 1.0
      %v897 = vadd.f32 %v870, 1.0
      %v898 = vadd.f32 %v872, 1.0
      %v899 = vadd.f32 %v874, 1.0
      %v900 = vadd.f32 %v876, 1.0
      %v901 = vadd.f32 %v878, 1.0
      %v902 = vadd.f32 %v880, 1.0
      %v903 = vadd.f32 %v882, 1.0
      %v904 = vadd.f32 %v884, 1.0
      %v905 = vadd.f32 %v886, 1.0
      %v906 = vadd.f32 %v888, 1.0
      %v907 = vadd.f32 %v890, 1.0
      %v908 = vadd.f32 %v892, 1.0
      %v909 = vrcp.pop %v893
      %v910 = vmul.f32 1.0, %v909
      %v911 = vrcp.pop %v894
      %v912 = vmul.f32 1.0, %v911
      %v913 = vrcp.pop %v895
      %v914 = vmul.f32 1.0, %v913
      %v915 = vrcp.pop %v896
      %v916 = vmul.f32 1.0, %v915
      %v917 = vrcp.pop %v897
      %v918 = vmul.f32 1.0, %v917
      %v919 = vrcp.pop %v898
      %v920 = vmul.f32 1.0, %v919
      %v921 = vrcp.pop %v899
      %v922 = vmul.f32 1.0, %v921
      %v923 = vrcp.pop %v900
      %v924 = vmul.f32 1.0, %v923
      %v925 = vrcp.pop %v901
      %v926 = vmul.f32 1.0, %v925
      %v927 = vrcp.pop %v902
      %v928 = vmul.f32 1.0, %v927
      %v929 = vrcp.pop %v903
      %v930 = vmul.f32 1.0, %v929
      %v931 = vrcp.pop %v904
      %v932 = vmul.f32 1.0, %v931
      %v933 = vrcp.pop %v905
      %v934 = vmul.f32 1.0, %v933
      %v935 = vrcp.pop %v906
      %v936 = vmul.f32 1.0, %v935
      %v937 = vrcp.pop %v907
      %v938 = vmul.f32 1.0, %v937
      %v939 = vrcp.pop %v908
      %v940 = vmul.f32 1.0, %v939
      %v941 = vmul.f32 %v437, %v910
      %v942 = vmul.f32 %v438, %v912
      %v943 = vmul.f32 %v439, %v914
      %v944 = vmul.f32 %v440, %v916
      %v945 = vmul.f32 %v441, %v918
      %v946 = vmul.f32 %v442, %v920
      %v947 = vmul.f32 %v443, %v922
      %v948 = vmul.f32 %v444, %v924
      %v949 = vmul.f32 %v445, %v926
      %v950 = vmul.f32 %v446, %v928
      %v951 = vmul.f32 %v447, %v930
      %v952 = vmul.f32 %v448, %v932
      %v953 = vmul.f32 %v449, %v934
      %v954 = vmul.f32 %v450, %v936
      %v955 = vmul.f32 %v451, %v938
      %v956 = vmul.f32 %v452, %v940
      %v957 = vsub.f32 1.0, %v910
      %v958 = vsub.f32 1.0, %v912
      %v959 = vsub.f32 1.0, %v914
      %v960 = vsub.f32 1.0, %v916
      %v961 = vsub.f32 1.0, %v918
      %v962 = vsub.f32 1.0, %v920
      %v963 = vsub.f32 1.0, %v922
      %v964 = vsub.f32 1.0, %v924
      %v965 = vsub.f32 1.0, %v926
      %v966 = vsub.f32 1.0, %v928
      %v967 = vsub.f32 1.0, %v930
      %v968 = vsub.f32 1.0, %v932
      %v969 = vsub.f32 1.0, %v934
      %v970 = vsub.f32 1.0, %v936
      %v971 = vsub.f32 1.0, %v938
      %v972 = vsub.f32 1.0, %v940
      %v973 = vmul.f32 %v453, %v957
      %v974 = vmul.f32 %v454, %v958
      %v975 = vmul.f32 %v455, %v959
      %v976 = vmul.f32 %v456, %v960
      %v977 = vmul.f32 %v457, %v961
      %v978 = vmul.f32 %v458, %v962
      %v979 = vmul.f32 %v459, %v963
      %v980 = vmul.f32 %v460, %v964
      %v981 = vmul.f32 %v461, %v965
      %v982 = vmul.f32 %v462, %v966
      %v983 = vmul.f32 %v463, %v967
      %v984 = vmul.f32 %v464, %v968
      %v985 = vmul.f32 %v465, %v969
      %v986 = vmul.f32 %v466, %v970
      %v987 = vmul.f32 %v467, %v971
      %v988 = vmul.f32 %v468, %v972
      %v989 = vadd.f32 %v941, %v973
      %v990 = vadd.f32 %v942, %v974
      %v991 = vadd.f32 %v943, %v975
      %v992 = vadd.f32 %v944, %v976
      %v993 = vadd.f32 %v945, %v977
      %v994 = vadd.f32 %v946, %v978
      %v995 = vadd.f32 %v947, %v979
      %v996 = vadd.f32 %v948, %v980
      %v997 = vadd.f32 %v949, %v981
      %v998 = vadd.f32 %v950, %v982
      %v999 = vadd.f32 %v951, %v983
      %v1000 = vadd.f32 %v952, %v984
      %v1001 = vadd.f32 %v953, %v985
      %v1002 = vadd.f32 %v954, %v986
      %v1003 = vadd.f32 %v955, %v987
      %v1004 = vadd.f32 %v956, %v988
      %1005 = vst [vmem:[%s435] sm:$0xff] %v989
      %1006 = vst [vmem:[%s435 + $0x8] sm:$0xff] %v990
      %1007 = vst [vmem:[%s435 + $0x10] sm:$0xff] %v991
      %1008 = vst [vmem:[%s435 + $0x18] sm:$0xff] %v992
      %1009 = vst [vmem:[%s435 + $0x20] sm:$0xff] %v993
      %1010 = vst [vmem:[%s435 + $0x28] sm:$0xff] %v994
      %1011 = vst [vmem:[%s435 + $0x30] sm:$0xff] %v995
      %1012 = vst [vmem:[%s435 + $0x38] sm:$0xff] %v996
      %1013 = vst [vmem:[%s435 + $0x40] sm:$0xff] %v997
      %1014 = vst [vmem:[%s435 + $0x48] sm:$0xff] %v998
      %1015 = vst [vmem:[%s435 + $0x50] sm:$0xff] %v999
      %1016 = vst [vmem:[%s435 + $0x58] sm:$0xff] %v1000
      %1017 = vst [vmem:[%s435 + $0x60] sm:$0xff] %v1001
      %1018 = vst [vmem:[%s435 + $0x68] sm:$0xff] %v1002
      %1019 = vst [vmem:[%s435 + $0x70] sm:$0xff] %v1003
      %1020 = vst [vmem:[%s435 + $0x78] sm:$0xff] %v1004
      %s1021 = smul.u32 2, %s24
      %p1022 = scmp.lt.s32.totalorder %s23, 1
      %s1023 = scalar_select %p1022, %s23, 1
      %p1024 = scmp.lt.s32.totalorder %s1021, 1
      %s1025 = scalar_select %p1024, %s1021, 1
      %s1026 = smul.addr %s1023, 16
      %s1027 = sadd.s32 %s1025, %s1026
      %s1028 = smul.addr %s1027, 8
      %s1029 = scalar_lea.vmem %s8, %s1028
      // Predicated region
      $region53: #{iaff_forward.3} parent=51 // pred_check
        %p1030 = pneg %p245
      $region54: #{iaff_forward.3} parent=51 // pred_check_branch
        %1032 = sbr.rel (%p1030) target = $region56
      $region55: #{iaff_forward.3} parent=51 // pred_region
        %s1033 = smul.u32 2, %s24
      $region56: #{iaff_forward.3} parent=51 // pred_fallthru
        _
    $region52: #{iaff_forward.3} parent=5 // pred_fallthru
      _
    %p1034 = scmp.le.s32.totalorder 2, %s14
    // Predicated region
    $region57: #{iaff_forward.3} parent=5 // pred_check
      %p1035 = pneg %p1034
    $region58: #{iaff_forward.3} parent=5 // pred_check_branch
      %1037 = sbr.rel (%p1035) target = $region60
    $region59: #{iaff_forward.3} parent=5 // pred_region
      %s1038 = ssub.s32 %s14, 2
      // Predicated region
      $region61: #{iaff_forward.3} parent=59 // pred_check
        %p1039 = pneg %p251
      $region62: #{iaff_forward.3} parent=59 // pred_check_branch
        %1041 = sbr.rel (%p1039) target = $region64
      $region63: #{iaff_forward.3} parent=59 // pred_region
        %s1042 = smul.u32 2, %s26
        %p1043 = scmp.lt.s32.totalorder %s25, 1
        %s1044 = scalar_select %p1043, %s25, 1
        %p1045 = scmp.lt.s32.totalorder %s1042, 1
        %s1046 = scalar_select %p1045, %s1042, 1
        %s1047 = smul.addr %s1044, 16
        %s1048 = sadd.s32 %s1046, %s1047
        %s1049 = smul.addr %s1048, 8
        %s1050 = scalar_lea.vmem %s8, %s1049
      $region64: #{iaff_forward.3} parent=59 // pred_fallthru
        _
    $region60: #{iaff_forward.3} parent=5 // pred_fallthru
      _
  $region6: #{iaff_forward.3} parent=0 // loop_footer
    %s18 = sadd.s32 1, %s14
  $region7: #{iaff_forward.3} parent=0 // loop_footer_branch
    %13 = sbr.rel target = $region3
  $region8: #{iaff_forward.3} parent=0 // loop_exit
    _

</llo_original>
